<compile_context>
chip_gen: v7x
topology: tpu7x:2x2x1
jax: 0.10.0
libtpu: 0.0.40
codegen_flags: <defaults>
</compile_context>

<pallas_src>
import jax
import jax.numpy as jnp
import numpy as np
from jax.experimental import pallas as pl
from jax.experimental.pallas import tpu as pltpu

EPS = 1e-5
NEG_INF = -1e30


def _self_attn_kernel(slots_ref, bid_row_ref, bid_col_ref, wqkv_ref, bqkv_ref,
                      wo_ref, pk_ref, maps_ref, out_ref):
    N, D = slots_ref.shape
    H, hd, _ = wo_ref.shape
    P2 = maps_ref.shape[1]
    P = P2 // 2
    DPAD = out_ref.shape[1] - P2

    x = slots_ref[...]                                    # [N, D] f32

    # --- additive batch mask built in-kernel from batch ids --------------------
    # (finite negative instead of -inf -> no NaN hazard even if a row were fully
    #  masked; the diagonal is always unmasked anyway.)
    neq = bid_col_ref[...] != bid_row_ref[...]            # [N,1] vs [1,N] -> [N,N]
    mask = jnp.where(neq, NEG_INF, 0.0).astype(jnp.float32)

    # --- in-projection: ONE batched matmul over the (3*H) q/k/v-head axis ------
    G = 3 * H
    xb = jnp.broadcast_to(x[None], (G, N, D))             # [3H, N, D]
    qkv = jnp.einsum("gnd,gde->gne", xb, wqkv_ref[...],
                     preferred_element_type=jnp.float32) + bqkv_ref[...]   # [3H,N,hd]
    scale = 1.0 / float(np.sqrt(hd))
    q = qkv[0:H] * scale                                  # [H, N, hd]
    k = qkv[H:2 * H]                                      # [H, N, hd]
    v = qkv[2 * H:3 * H]                                  # [H, N, hd]

    # --- batched attention over all heads at once -------------------------------
    s = jnp.einsum("hqd,hkd->hqk", q, k,
                   preferred_element_type=jnp.float32) + mask              # [H,N,N]
    s = s - jnp.max(s, axis=-1, keepdims=True)
    e = jnp.exp(s)
    p = e * pl.reciprocal(jnp.sum(e, axis=-1, keepdims=True), approx=True)  # softmax
    ctx = jnp.einsum("hqk,hkd->hqd", p, v,
                     preferred_element_type=jnp.float32)                    # [H,N,hd]

    # --- out-projection (batched per head, summed) + residual + LayerNorm ------
    delta = jnp.sum(jnp.einsum("hqd,hdf->hqf", ctx, wo_ref[...],
                               preferred_element_type=jnp.float32), axis=0)  # [N,D]
    y = x + delta + pk_ref[0:1, :]                        # out-proj bias; dropout = id
    mu = jnp.mean(y, axis=-1, keepdims=True)
    yc = y - mu
    var = jnp.mean(yc * yc, axis=-1, keepdims=True)
    slots_out = yc * jax.lax.rsqrt(var + EPS) * pk_ref[1:2, :] + pk_ref[2:3, :]

    # --- fused seg/curio update: one (attn_sum)^T @ [seg | curio] matmul --------
    attn_sum = jnp.sum(p, axis=0)                         # [N,N] = num_heads * attn_w
    both = maps_ref[...]                                  # [N, 2P]
    d_both = jax.lax.dot_general(                         # attn_sum.T @ both (trans_a)
        attn_sum, both, (((0,), (0,)), ((), ())),
        preferred_element_type=jnp.float32)               # [N, 2P]

    c_seg_self = pk_ref[3:4, 0:1]                         # 1 / seg_norm
    c_seg_attn = pk_ref[3:4, 1:2]                         # seg_weight / (H * seg_norm)
    c_cur_attn = pk_ref[3:4, 2:3]                         # curio_weight / H

    seg_out = both[:, 0:P] * c_seg_self + d_both[:, 0:P] * c_seg_attn

    # TODO(synk): the `curio_weight.requires_grad` early-return in the module is a
    # training-graph concept; the curiosity update is always applied here.
    c = both[:, P:] + d_both[:, P:] * c_cur_attn
    cmu = jnp.mean(c, axis=-1, keepdims=True)
    cc = c - cmu
    cvar = jnp.mean(cc * cc, axis=-1, keepdims=True)
    curio_out = cc * jax.lax.rsqrt(cvar + EPS)            # F.layer_norm, no affine

    # --- lane-dense stores into the combined 128-aligned output slab -----------
    if DPAD > D:
        slots_pad = jnp.concatenate(
            [slots_out, jnp.zeros((N, DPAD - D), jnp.float32)], axis=-1)
    else:
        slots_pad = slots_out
    out_ref[:, 0:DPAD] = slots_pad
    out_ref[:, DPAD:DPAD + P] = seg_out
    out_ref[:, DPAD + P:] = curio_out


def sample_self_attention_batched(slots, batch_ids, seg_maps, curio_maps,
                                  params, num_heads):
    """Batched forward: slots [B,N,D]; batch_ids [B,N]; seg/curio [B,N,fH,fW]."""
    B, N, D = slots.shape
    _, _, fH, fW = seg_maps.shape
    P = fH * fW
    H = num_heads
    hd = D // H
    DPAD = ((D + 127) // 128) * 128          # lane-dense slot segment of the output
    OUT_W = DPAD + 2 * P
    f32 = jnp.float32

    x = slots.astype(f32)
    bid = batch_ids.astype(jnp.int32)
    bid_row = bid.reshape(B, 1, N)
    bid_col = bid.reshape(B, N, 1)

    # Per-head weight layouts prepared once in XLA (free relative to the kernel):
    #   wqkv3[g] = in_proj_weight[g*hd:(g+1)*hd, :].T   for g in [0, 3H)
    #   wo3[h]   = out_proj_weight.T[h*hd:(h+1)*hd, :]
    wqkv3 = params["in_proj_weight"].astype(f32).reshape(3 * H, hd, D).transpose(0, 2, 1)
    bqkv3 = params["in_proj_bias"].astype(f32).reshape(3 * H, 1, hd)
    wo3 = params["out_proj_weight"].T.astype(f32).reshape(H, hd, D)

    # Packed small params: rows = [out_proj_bias, ln_weight, ln_bias, folded scalars].
    inv_seg_norm = 1.0 / params["seg_norm"][0]
    scal = jnp.stack([inv_seg_norm,
                      params["seg_weight"][0] * inv_seg_norm / H,
                      params["curio_weight"][0] / H]).astype(f32)
    pk = jnp.stack([params["out_proj_bias"].astype(f32),
                    params["ln_weight"].astype(f32),
                    params["ln_bias"].astype(f32),
                    jnp.pad(scal, (0, D - 3))], axis=0)            # [4, D]

    both = jnp.concatenate([seg_maps.reshape(B, N, P),
                            curio_maps.reshape(B, N, P)], axis=-1).astype(f32)

    out = pl.pallas_call(
        _self_attn_kernel,
        out_shape=jax.ShapeDtypeStruct((B, N, OUT_W), f32),
        grid_spec=pltpu.PrefetchScalarGridSpec(
            num_scalar_prefetch=0,
            grid=(B,),
            in_specs=[
                pl.BlockSpec((None, N, D), lambda b: (b, 0, 0)),       # slots
                pl.BlockSpec((None, 1, N), lambda b: (b, 0, 0)),       # batch ids (row)
                pl.BlockSpec((None, N, 1), lambda b: (b, 0, 0)),       # batch ids (col)
                pl.BlockSpec((3 * H, D, hd), lambda b: (0, 0, 0)),     # per-head qkv W
                pl.BlockSpec((3 * H, 1, hd), lambda b: (0, 0, 0)),     # per-head qkv b
                pl.BlockSpec((H, hd, D), lambda b: (0, 0, 0)),         # per-head out W
                pl.BlockSpec((4, D), lambda b: (0, 0)),                # packed params
                pl.BlockSpec((None, N, 2 * P), lambda b: (b, 0, 0)),   # [seg | curio]
            ],
            out_specs=pl.BlockSpec((None, N, OUT_W), lambda b: (b, 0, 0)),
        ),
        compiler_params=pltpu.CompilerParams(
            dimension_semantics=("parallel",)),
    )(x, bid_row, bid_col, wqkv3, bqkv3, wo3, pk, both)

    slots_out = out[:, :, 0:D]
    seg_out = out[:, :, DPAD:DPAD + P].reshape(B, N, fH, fW)
    curio_out = out[:, :, DPAD + P:].reshape(B, N, fH, fW)
    return slots_out, seg_out, curio_out


def sample_self_attention(slots, batch_ids, seg_maps, curio_maps, params, num_heads):
    """Module-faithful signature: slots [1,N,D]; batch_ids [N]; maps [N,fH,fW]."""
    slots_out, seg_out, curio_out = sample_self_attention_batched(
        slots, batch_ids[None], seg_maps[None], curio_maps[None], params, num_heads)
    return slots_out, seg_out[0], curio_out[0]


def _reference(slots, batch_ids, seg_maps, curio_maps, params, num_heads):
    """Pure-JAX reference of the same math (mirrors PyTorch eval semantics)."""
    _, N, D = slots.shape
    _, fH, fW = seg_maps.shape
    P = fH * fW
    hd = D // num_heads
    x = slots[0]
    qkv = x @ params["in_proj_weight"].T + params["in_proj_bias"]
    q, k, v = qkv[:, :D], qkv[:, D:2 * D], qkv[:, 2 * D:]
    q = q.reshape(N, num_heads, hd).transpose(1, 0, 2) / np.sqrt(hd)
    k = k.reshape(N, num_heads, hd).transpose(1, 0, 2)
    v = v.reshape(N, num_heads, hd).transpose(1, 0, 2)
    mask = jnp.where(batch_ids[:, None] != batch_ids[None, :], -jnp.inf, 0.0)
    s = jnp.einsum("hqd,hkd->hqk", q, k) + mask[None]
    p = jax.nn.softmax(s, axis=-1)
    attn_w = p.mean(0)
    out = jnp.einsum("hqk,hkd->hqd", p, v).transpose(1, 0, 2).reshape(N, D)
    delta = out @ params["out_proj_weight"].T + params["out_proj_bias"]
    y = x + delta
    mu = y.mean(-1, keepdims=True)
    var = ((y - mu) ** 2).mean(-1, keepdims=True)
    y = (y - mu) / jnp.sqrt(var + EPS) * params["ln_weight"] + params["ln_bias"]
    seg = seg_maps.reshape(N, P)
    seg = (seg + params["seg_weight"][0] * (attn_w.T @ seg)) / params["seg_norm"][0]
    cur = curio_maps.reshape(N, P)
    cur = cur + params["curio_weight"][0] * (attn_w.T @ cur)
    cmu = cur.mean(-1, keepdims=True)
    cvar = ((cur - cmu) ** 2).mean(-1, keepdims=True)
    cur = (cur - cmu) / jnp.sqrt(cvar + EPS)
    return y[None], seg.reshape(N, fH, fW), cur.reshape(N, fH, fW)


if __name__ == "__main__":
    N, D, num_heads, fH, fW = 8, 32, 4, 16, 16

    key = jax.random.PRNGKey(0)
    ks = jax.random.split(key, 12)
    params = {
        "in_proj_weight": 0.1 * jax.random.normal(ks[0], (3 * D, D), jnp.float32),
        "in_proj_bias": 0.05 * jax.random.normal(ks[1], (3 * D,), jnp.float32),
        "out_proj_weight": 0.1 * jax.random.normal(ks[2], (D, D), jnp.float32),
        "out_proj_bias": 0.05 * jax.random.normal(ks[3], (D,), jnp.float32),
        "ln_weight": 1.0 + 0.1 * jax.random.normal(ks[7], (D,), jnp.float32),
        "ln_bias": 0.05 * jax.random.normal(ks[8], (D,), jnp.float32),
        "seg_weight": jnp.array([1.3], jnp.float32),
        "seg_norm": jnp.array([2.0], jnp.float32),
        "curio_weight": jnp.array([0.7], jnp.float32),
    }

    # Tolerance covers the EUP approximate-reciprocal softmax normalization.
    tol = dict(atol=2e-2, rtol=2e-2)

    # ---- single-sample call (module-faithful shapes) ----
    slots = jax.random.normal(ks[4], (1, N, D), jnp.float32)
    batch_ids = jnp.array([0, 0, 0, 0, 1, 1, 1, 1], jnp.int32)
    seg_maps = jax.random.normal(ks[5], (N, fH, fW), jnp.float32)
    curio_maps = jax.random.normal(ks[6], (N, fH, fW), jnp.float32)

    slots_out, seg_out, curio_out = sample_self_attention(
        slots, batch_ids, seg_maps, curio_maps, params, num_heads)
    jax.block_until_ready((slots_out, seg_out, curio_out))

    ref_slots, ref_seg, ref_cur = _reference(
        slots, batch_ids, seg_maps, curio_maps, params, num_heads)
    np.testing.assert_allclose(np.asarray(slots_out), np.asarray(ref_slots), **tol)
    np.testing.assert_allclose(np.asarray(seg_out), np.asarray(ref_seg), **tol)
    np.testing.assert_allclose(np.asarray(curio_out), np.asarray(ref_cur), **tol)

    # ---- batched call: grid=(B,) samples, "parallel" -> both v7x TensorCores ----
    B = 3
    slots_b = jax.random.normal(ks[9], (B, N, D), jnp.float32)
    bids_b = jnp.stack([batch_ids,
                        jnp.array([0, 0, 1, 1, 2, 2, 3, 3], jnp.int32),
                        jnp.zeros((N,), jnp.int32)])
    seg_b = jax.random.normal(ks[10], (B, N, fH, fW), jnp.float32)
    cur_b = jax.random.normal(ks[11], (B, N, fH, fW), jnp.float32)

    so_b, sg_b, cu_b = sample_self_attention_batched(
        slots_b, bids_b, seg_b, cur_b, params, num_heads)
    jax.block_until_ready((so_b, sg_b, cu_b))

    for b in range(B):
        rs, rg, rc = _reference(slots_b[b:b + 1], bids_b[b], seg_b[b], cur_b[b],
                                params, num_heads)
        np.testing.assert_allclose(np.asarray(so_b[b]), np.asarray(rs[0]), **tol)
        np.testing.assert_allclose(np.asarray(sg_b[b]), np.asarray(rg), **tol)
        np.testing.assert_allclose(np.asarray(cu_b[b]), np.asarray(rc), **tol)

    print("KERNEL_OK")
</pallas_src>

<mosaic_0001>
module attributes {stable_mosaic.version = 11 : i64} {
  func.func @_self_attn_kernel(%arg0: i32, %arg1: memref<1x8x32xf32, #tpu.memory_space<vmem>>, %arg2: memref<1x1x8xi32, #tpu.memory_space<vmem>>, %arg3: memref<1x8x1xi32, #tpu.memory_space<vmem>>, %arg4: memref<12x32x8xf32, #tpu.memory_space<vmem>>, %arg5: memref<12x1x8xf32, #tpu.memory_space<vmem>>, %arg6: memref<4x8x32xf32, #tpu.memory_space<vmem>>, %arg7: memref<4x32xf32, #tpu.memory_space<vmem>>, %arg8: memref<1x8x512xf32, #tpu.memory_space<vmem>>, %arg9: memref<1x8x640xf32, #tpu.memory_space<vmem>>) attributes {dimension_semantics = [#tpu.dimension_semantics<parallel>], iteration_bounds = array<i64: 1>, scalar_prefetch = 0 : i64, scratch_operands = 0 : i64, tpu.core_type = #tpu.core_type<tc>, window_params = [{transform_indices = @transform_0, window_bounds = array<i64: 1, 8, 32>}, {transform_indices = @transform_1, window_bounds = array<i64: 1, 1, 8>}, {transform_indices = @transform_2, window_bounds = array<i64: 1, 8, 1>}, {pipeline_mode = #tpu.pipeline_mode<synchronous>, transform_indices = @transform_3, window_bounds = array<i64: 12, 32, 8>}, {pipeline_mode = #tpu.pipeline_mode<synchronous>, transform_indices = @transform_4, window_bounds = array<i64: 12, 1, 8>}, {pipeline_mode = #tpu.pipeline_mode<synchronous>, transform_indices = @transform_5, window_bounds = array<i64: 4, 8, 32>}, {pipeline_mode = #tpu.pipeline_mode<synchronous>, transform_indices = @transform_6, window_bounds = array<i64: 4, 32>}, {transform_indices = @transform_7, window_bounds = array<i64: 1, 8, 512>}, {transform_indices = @transform_8, window_bounds = array<i64: 1, 8, 640>}]} {
    %c0 = arith.constant 0 : index
    %c0_0 = arith.constant 0 : index
    %c0_1 = arith.constant 0 : index
    %0 = vector.load %arg1[%c0, %c0_0, %c0_1] : memref<1x8x32xf32, #tpu.memory_space<vmem>>, vector<1x8x32xf32>
    %1 = vector.shape_cast %0 : vector<1x8x32xf32> to vector<8x32xf32>
    %c0_2 = arith.constant 0 : index
    %c0_3 = arith.constant 0 : index
    %c0_4 = arith.constant 0 : index
    %2 = vector.load %arg3[%c0_2, %c0_3, %c0_4] : memref<1x8x1xi32, #tpu.memory_space<vmem>>, vector<1x8x1xi32>
    %3 = vector.shape_cast %2 : vector<1x8x1xi32> to vector<8x1xi32>
    %c0_5 = arith.constant 0 : index
    %c0_6 = arith.constant 0 : index
    %c0_7 = arith.constant 0 : index
    %4 = vector.load %arg2[%c0_5, %c0_6, %c0_7] : memref<1x1x8xi32, #tpu.memory_space<vmem>>, vector<1x1x8xi32>
    %5 = vector.shape_cast %4 : vector<1x1x8xi32> to vector<1x8xi32>
    %6 = vector.broadcast %3 : vector<8x1xi32> to vector<8x8xi32>
    %7 = vector.broadcast %5 : vector<1x8xi32> to vector<8x8xi32>
    %8 = arith.cmpi ne, %6, %7 : vector<8x8xi32>
    %cst = arith.constant -1.000000e+30 : f32
    %cst_8 = arith.constant 0.000000e+00 : f32
    %9 = vector.broadcast %cst : f32 to vector<8x8xf32>
    %10 = vector.broadcast %cst_8 : f32 to vector<8x8xf32>
    %11 = arith.select %8, %9, %10 : vector<8x8xi1>, vector<8x8xf32>
    %12 = vector.shape_cast %1 : vector<8x32xf32> to vector<1x8x32xf32>
    %13 = vector.shape_cast %12 : vector<1x8x32xf32> to vector<1x8x32xf32>
    %14 = vector.broadcast %13 : vector<1x8x32xf32> to vector<12x8x32xf32>
    %c0_9 = arith.constant 0 : index
    %c0_10 = arith.constant 0 : index
    %c0_11 = arith.constant 0 : index
    %15 = vector.load %arg4[%c0_9, %c0_10, %c0_11] : memref<12x32x8xf32, #tpu.memory_space<vmem>>, vector<12x32x8xf32>
    "tpu.trace_start"() <{level = 10 : i32, message = "gnd,gde->gne"}> : () -> ()
    %cst_12 = arith.constant dense<0.000000e+00> : vector<12x8x8xf32>
    %16 = tpu.matmul %14, %15, %cst_12 {dimension_numbers = #tpu.dot_dimension_numbers<[2], [1], [1], [2], [0, 0, 0, 1, 1, 2], [0], [0]>} : vector<12x8x32xf32>, vector<12x32x8xf32>, vector<12x8x8xf32> -> vector<12x8x8xf32>
    "tpu.trace_stop"() : () -> ()
    %c0_13 = arith.constant 0 : index
    %c0_14 = arith.constant 0 : index
    %c0_15 = arith.constant 0 : index
    %17 = vector.load %arg5[%c0_13, %c0_14, %c0_15] : memref<12x1x8xf32, #tpu.memory_space<vmem>>, vector<12x1x8xf32>
    %18 = vector.broadcast %17 : vector<12x1x8xf32> to vector<12x8x8xf32>
    %19 = arith.addf %16, %18 : vector<12x8x8xf32>
    %20 = vector.extract_strided_slice %19 {offsets = [0, 0, 0], sizes = [4, 8, 8], strides = [1, 1, 1]} : vector<12x8x8xf32> to vector<4x8x8xf32>
    %cst_16 = arith.constant 0.353553385 : f32
    %21 = vector.broadcast %cst_16 : f32 to vector<4x8x8xf32>
    %22 = arith.mulf %20, %21 : vector<4x8x8xf32>
    %23 = vector.extract_strided_slice %19 {offsets = [4, 0, 0], sizes = [4, 8, 8], strides = [1, 1, 1]} : vector<12x8x8xf32> to vector<4x8x8xf32>
    %24 = vector.extract_strided_slice %19 {offsets = [8, 0, 0], sizes = [4, 8, 8], strides = [1, 1, 1]} : vector<12x8x8xf32> to vector<4x8x8xf32>
    "tpu.trace_start"() <{level = 10 : i32, message = "hqd,hkd->hqk"}> : () -> ()
    %cst_17 = arith.constant dense<0.000000e+00> : vector<4x8x8xf32>
    %25 = tpu.matmul %22, %23, %cst_17 {dimension_numbers = #tpu.dot_dimension_numbers<[2], [2], [1], [1], [0, 0, 0, 1, 1, 1], [0], [0]>} : vector<4x8x8xf32>, vector<4x8x8xf32>, vector<4x8x8xf32> -> vector<4x8x8xf32>
    "tpu.trace_stop"() : () -> ()
    %26 = vector.shape_cast %11 : vector<8x8xf32> to vector<1x8x8xf32>
    %27 = vector.broadcast %26 : vector<1x8x8xf32> to vector<4x8x8xf32>
    %28 = arith.addf %25, %27 : vector<4x8x8xf32>
    %cst_18 = arith.constant dense<0xFF800000> : vector<4x8xf32>
    %29 = vector.multi_reduction <maximumf>, %28, %cst_18 [2] : vector<4x8x8xf32> to vector<4x8xf32>
    %30 = vector.shape_cast %29 : vector<4x8xf32> to vector<4x8x1xf32>
    %31 = vector.broadcast %30 : vector<4x8x1xf32> to vector<4x8x8xf32>
    %32 = arith.subf %28, %31 : vector<4x8x8xf32>
    %33 = math.exp %32 : vector<4x8x8xf32>
    %cst_19 = arith.constant dense<0.000000e+00> : vector<4x8xf32>
    %34 = vector.multi_reduction <add>, %33, %cst_19 [2] : vector<4x8x8xf32> to vector<4x8xf32>
    %35 = vector.shape_cast %34 : vector<4x8xf32> to vector<4x8x1xf32>
    %36 = tpu.reciprocal %35 {approx = true} : vector<4x8x1xf32> -> vector<4x8x1xf32>
    %37 = vector.broadcast %36 : vector<4x8x1xf32> to vector<4x8x8xf32>
    %38 = arith.mulf %33, %37 : vector<4x8x8xf32>
    "tpu.trace_start"() <{level = 10 : i32, message = "hqk,hkd->hqd"}> : () -> ()
    %cst_20 = arith.constant dense<0.000000e+00> : vector<4x8x8xf32>
    %39 = tpu.matmul %38, %24, %cst_20 {dimension_numbers = #tpu.dot_dimension_numbers<[2], [1], [1], [2], [0, 0, 0, 1, 1, 2], [0], [0]>} : vector<4x8x8xf32>, vector<4x8x8xf32>, vector<4x8x8xf32> -> vector<4x8x8xf32>
    "tpu.trace_stop"() : () -> ()
    %c0_21 = arith.constant 0 : index
    %c0_22 = arith.constant 0 : index
    %c0_23 = arith.constant 0 : index
    %40 = vector.load %arg6[%c0_21, %c0_22, %c0_23] : memref<4x8x32xf32, #tpu.memory_space<vmem>>, vector<4x8x32xf32>
    "tpu.trace_start"() <{level = 10 : i32, message = "hqd,hdf->hqf"}> : () -> ()
    %cst_24 = arith.constant dense<0.000000e+00> : vector<4x8x32xf32>
    %41 = tpu.matmul %39, %40, %cst_24 {dimension_numbers = #tpu.dot_dimension_numbers<[2], [1], [1], [2], [0, 0, 0, 1, 1, 2], [0], [0]>} : vector<4x8x8xf32>, vector<4x8x32xf32>, vector<4x8x32xf32> -> vector<4x8x32xf32>
    "tpu.trace_stop"() : () -> ()
    %cst_25 = arith.constant dense<0.000000e+00> : vector<8x32xf32>
    %42 = vector.multi_reduction <add>, %41, %cst_25 [0] : vector<4x8x32xf32> to vector<8x32xf32>
    %43 = arith.addf %1, %42 : vector<8x32xf32>
    %c0_26 = arith.constant 0 : index
    %c0_27 = arith.constant 0 : index
    %44 = vector.load %arg7[%c0_26, %c0_27] : memref<4x32xf32, #tpu.memory_space<vmem>>, vector<1x32xf32>
    %45 = vector.broadcast %44 : vector<1x32xf32> to vector<8x32xf32>
    %46 = arith.addf %43, %45 : vector<8x32xf32>
    %cst_28 = arith.constant dense<0.000000e+00> : vector<8xf32>
    %47 = vector.multi_reduction <add>, %46, %cst_28 [1] : vector<8x32xf32> to vector<8xf32>
    %48 = vector.shape_cast %47 : vector<8xf32> to vector<8x1xf32>
    %cst_29 = arith.constant 3.200000e+01 : f32
    %49 = vector.broadcast %cst_29 : f32 to vector<8x1xf32>
    %50 = arith.divf %48, %49 : vector<8x1xf32>
    %51 = vector.broadcast %50 : vector<8x1xf32> to vector<8x32xf32>
    %52 = arith.subf %46, %51 : vector<8x32xf32>
    %53 = arith.mulf %52, %52 : vector<8x32xf32>
    %cst_30 = arith.constant dense<0.000000e+00> : vector<8xf32>
    %54 = vector.multi_reduction <add>, %53, %cst_30 [1] : vector<8x32xf32> to vector<8xf32>
    %55 = vector.shape_cast %54 : vector<8xf32> to vector<8x1xf32>
    %cst_31 = arith.constant 3.200000e+01 : f32
    %56 = vector.broadcast %cst_31 : f32 to vector<8x1xf32>
    %57 = arith.divf %55, %56 : vector<8x1xf32>
    %cst_32 = arith.constant 9.99999974E-6 : f32
    %58 = vector.broadcast %cst_32 : f32 to vector<8x1xf32>
    %59 = arith.addf %57, %58 : vector<8x1xf32>
    %60 = math.rsqrt %59 : vector<8x1xf32>
    %61 = vector.broadcast %60 : vector<8x1xf32> to vector<8x32xf32>
    %62 = arith.mulf %52, %61 : vector<8x32xf32>
    %c1 = arith.constant 1 : index
    %c0_33 = arith.constant 0 : index
    %63 = vector.load %arg7[%c1, %c0_33] : memref<4x32xf32, #tpu.memory_space<vmem>>, vector<1x32xf32>
    %64 = vector.broadcast %63 : vector<1x32xf32> to vector<8x32xf32>
    %65 = arith.mulf %62, %64 : vector<8x32xf32>
    %c2 = arith.constant 2 : index
    %c0_34 = arith.constant 0 : index
    %66 = vector.load %arg7[%c2, %c0_34] : memref<4x32xf32, #tpu.memory_space<vmem>>, vector<1x32xf32>
    %67 = vector.broadcast %66 : vector<1x32xf32> to vector<8x32xf32>
    %68 = arith.addf %65, %67 : vector<8x32xf32>
    %cst_35 = arith.constant dense<0.000000e+00> : vector<8x8xf32>
    %69 = vector.multi_reduction <add>, %38, %cst_35 [0] : vector<4x8x8xf32> to vector<8x8xf32>
    %c0_36 = arith.constant 0 : index
    %c0_37 = arith.constant 0 : index
    %c0_38 = arith.constant 0 : index
    %70 = vector.load %arg8[%c0_36, %c0_37, %c0_38] : memref<1x8x512xf32, #tpu.memory_space<vmem>>, vector<1x8x512xf32>
    %71 = vector.shape_cast %70 : vector<1x8x512xf32> to vector<8x512xf32>
    %cst_39 = arith.constant dense<0.000000e+00> : vector<8x512xf32>
    %72 = tpu.matmul %69, %71, %cst_39 {dimension_numbers = #tpu.dot_dimension_numbers<[0], [0], [1], [1], [0, 1, 1, 1], [], []>} : vector<8x8xf32>, vector<8x512xf32>, vector<8x512xf32> -> vector<8x512xf32>
    %c3 = arith.constant 3 : index
    %c0_40 = arith.constant 0 : index
    %73 = vector.load %arg7[%c3, %c0_40] : memref<4x32xf32, #tpu.memory_space<vmem>>, vector<1x1xf32>
    %c3_41 = arith.constant 3 : index
    %c1_42 = arith.constant 1 : index
    %74 = vector.load %arg7[%c3_41, %c1_42] : memref<4x32xf32, #tpu.memory_space<vmem>>, vector<1x1xf32>
    %c3_43 = arith.constant 3 : index
    %c2_44 = arith.constant 2 : index
    %75 = vector.load %arg7[%c3_43, %c2_44] : memref<4x32xf32, #tpu.memory_space<vmem>>, vector<1x1xf32>
    %76 = vector.extract_strided_slice %71 {offsets = [0, 0], sizes = [8, 256], strides = [1, 1]} : vector<8x512xf32> to vector<8x256xf32>
    %77 = vector.broadcast %73 : vector<1x1xf32> to vector<8x256xf32>
    %78 = arith.mulf %76, %77 : vector<8x256xf32>
    %79 = vector.extract_strided_slice %72 {offsets = [0, 0], sizes = [8, 256], strides = [1, 1]} : vector<8x512xf32> to vector<8x256xf32>
    %80 = vector.broadcast %74 : vector<1x1xf32> to vector<8x256xf32>
    %81 = arith.mulf %79, %80 : vector<8x256xf32>
    %82 = arith.addf %78, %81 : vector<8x256xf32>
    %83 = vector.extract_strided_slice %71 {offsets = [0, 256], sizes = [8, 256], strides = [1, 1]} : vector<8x512xf32> to vector<8x256xf32>
    %84 = vector.extract_strided_slice %72 {offsets = [0, 256], sizes = [8, 256], strides = [1, 1]} : vector<8x512xf32> to vector<8x256xf32>
    %85 = vector.broadcast %75 : vector<1x1xf32> to vector<8x256xf32>
    %86 = arith.mulf %84, %85 : vector<8x256xf32>
    %87 = arith.addf %83, %86 : vector<8x256xf32>
    %cst_45 = arith.constant dense<0.000000e+00> : vector<8xf32>
    %88 = vector.multi_reduction <add>, %87, %cst_45 [1] : vector<8x256xf32> to vector<8xf32>
    %89 = vector.shape_cast %88 : vector<8xf32> to vector<8x1xf32>
    %cst_46 = arith.constant 2.560000e+02 : f32
    %90 = vector.broadcast %cst_46 : f32 to vector<8x1xf32>
    %91 = arith.divf %89, %90 : vector<8x1xf32>
    %92 = vector.broadcast %91 : vector<8x1xf32> to vector<8x256xf32>
    %93 = arith.subf %87, %92 : vector<8x256xf32>
    %94 = arith.mulf %93, %93 : vector<8x256xf32>
    %cst_47 = arith.constant dense<0.000000e+00> : vector<8xf32>
    %95 = vector.multi_reduction <add>, %94, %cst_47 [1] : vector<8x256xf32> to vector<8xf32>
    %96 = vector.shape_cast %95 : vector<8xf32> to vector<8x1xf32>
    %cst_48 = arith.constant 2.560000e+02 : f32
    %97 = vector.broadcast %cst_48 : f32 to vector<8x1xf32>
    %98 = arith.divf %96, %97 : vector<8x1xf32>
    %cst_49 = arith.constant 9.99999974E-6 : f32
    %99 = vector.broadcast %cst_49 : f32 to vector<8x1xf32>
    %100 = arith.addf %98, %99 : vector<8x1xf32>
    %101 = math.rsqrt %100 : vector<8x1xf32>
    %102 = vector.broadcast %101 : vector<8x1xf32> to vector<8x256xf32>
    %103 = arith.mulf %93, %102 : vector<8x256xf32>
    %cst_50 = arith.constant 0.000000e+00 : f32
    %104 = vector.broadcast %cst_50 : f32 to vector<8x96xf32>
    %105 = tpu.concatenate %68, %104 in 1 : vector<8x32xf32>, vector<8x96xf32> -> vector<8x128xf32>
    %c0_51 = arith.constant 0 : index
    %c0_52 = arith.constant 0 : index
    %c0_53 = arith.constant 0 : index
    %106 = vector.load %arg9[%c0_51, %c0_52, %c0_53] : memref<1x8x640xf32, #tpu.memory_space<vmem>>, vector<1x8x128xf32>
    %107 = vector.shape_cast %106 : vector<1x8x128xf32> to vector<8x128xf32>
    %108 = vector.shape_cast %105 : vector<8x128xf32> to vector<1x8x128xf32>
    tpu.vector_store %arg9[%c0_51, %c0_52, %c0_53], %108 {strides = array<i32>} : memref<1x8x640xf32, #tpu.memory_space<vmem>>, vector<1x8x128xf32>,
    %c0_54 = arith.constant 0 : index
    %c0_55 = arith.constant 0 : index
    %c128 = arith.constant 128 : index
    %109 = vector.load %arg9[%c0_54, %c0_55, %c128] : memref<1x8x640xf32, #tpu.memory_space<vmem>>, vector<1x8x256xf32>
    %110 = vector.shape_cast %109 : vector<1x8x256xf32> to vector<8x256xf32>
    %111 = vector.shape_cast %82 : vector<8x256xf32> to vector<1x8x256xf32>
    tpu.vector_store %arg9[%c0_54, %c0_55, %c128], %111 {strides = array<i32>} : memref<1x8x640xf32, #tpu.memory_space<vmem>>, vector<1x8x256xf32>,
    %c0_56 = arith.constant 0 : index
    %c0_57 = arith.constant 0 : index
    %c384 = arith.constant 384 : index
    %112 = vector.load %arg9[%c0_56, %c0_57, %c384] : memref<1x8x640xf32, #tpu.memory_space<vmem>>, vector<1x8x256xf32>
    %113 = vector.shape_cast %112 : vector<1x8x256xf32> to vector<8x256xf32>
    %114 = vector.shape_cast %103 : vector<8x256xf32> to vector<1x8x256xf32>
    tpu.vector_store %arg9[%c0_56, %c0_57, %c384], %114 {strides = array<i32>} : memref<1x8x640xf32, #tpu.memory_space<vmem>>, vector<1x8x256xf32>,
    return
  }
  func.func @transform_0(%arg0: i32) -> (i32, i32, i32) {
    %c0_i32 = arith.constant 0 : i32
    %c0_i32_0 = arith.constant 0 : i32
    %c0_i32_1 = arith.constant 0 : i32
    return %arg0, %c0_i32, %c0_i32_0 : i32, i32, i32
  }
  func.func @transform_1(%arg0: i32) -> (i32, i32, i32) {
    %c0_i32 = arith.constant 0 : i32
    %c0_i32_0 = arith.constant 0 : i32
    %c0_i32_1 = arith.constant 0 : i32
    return %arg0, %c0_i32, %c0_i32_0 : i32, i32, i32
  }
  func.func @transform_2(%arg0: i32) -> (i32, i32, i32) {
    %c0_i32 = arith.constant 0 : i32
    %c0_i32_0 = arith.constant 0 : i32
    %c0_i32_1 = arith.constant 0 : i32
    return %arg0, %c0_i32, %c0_i32_0 : i32, i32, i32
  }
  func.func @transform_3(%arg0: i32) -> (i32, i32, i32) {
    %c0_i32 = arith.constant 0 : i32
    %c0_i32_0 = arith.constant 0 : i32
    %c0_i32_1 = arith.constant 0 : i32
    %c0_i32_2 = arith.constant 0 : i32
    return %c0_i32, %c0_i32_0, %c0_i32_1 : i32, i32, i32
  }
  func.func @transform_4(%arg0: i32) -> (i32, i32, i32) {
    %c0_i32 = arith.constant 0 : i32
    %c0_i32_0 = arith.constant 0 : i32
    %c0_i32_1 = arith.constant 0 : i32
    %c0_i32_2 = arith.constant 0 : i32
    return %c0_i32, %c0_i32_0, %c0_i32_1 : i32, i32, i32
  }
  func.func @transform_5(%arg0: i32) -> (i32, i32, i32) {
    %c0_i32 = arith.constant 0 : i32
    %c0_i32_0 = arith.constant 0 : i32
    %c0_i32_1 = arith.constant 0 : i32
    %c0_i32_2 = arith.constant 0 : i32
    return %c0_i32, %c0_i32_0, %c0_i32_1 : i32, i32, i32
  }
  func.func @transform_6(%arg0: i32) -> (i32, i32) {
    %c0_i32 = arith.constant 0 : i32
    %c0_i32_0 = arith.constant 0 : i32
    %c0_i32_1 = arith.constant 0 : i32
    return %c0_i32, %c0_i32_0 : i32, i32
  }
  func.func @transform_7(%arg0: i32) -> (i32, i32, i32) {
    %c0_i32 = arith.constant 0 : i32
    %c0_i32_0 = arith.constant 0 : i32
    %c0_i32_1 = arith.constant 0 : i32
    return %arg0, %c0_i32, %c0_i32_0 : i32, i32, i32
  }
  func.func @transform_8(%arg0: i32) -> (i32, i32, i32) {
    %c0_i32 = arith.constant 0 : i32
    %c0_i32_0 = arith.constant 0 : i32
    %c0_i32_1 = arith.constant 0 : i32
    return %arg0, %c0_i32, %c0_i32_0 : i32, i32, i32
  }
}

</mosaic_0001>

<llo_original>
// kernel: tpu_custom_call.1
$region0: #{tpu_custom_call.1}
  #allocation0 [shape = 'u32[]', space=smem, size = 0x4, offset = 0x4, fixed_abs, tag = 'smem constant byte address 0x4 - core index']
  #allocation1 [shape = 'u32[144,128]{1,0:T(1,128)}', space=vmem, size = 0x12000, scoped, tag = 'internal scratch']
  %s0 = inlined_call_operand.vmem [shape: f32[1,8,32], index: 0, kind: input, shape index: {}]
  %s1 = inlined_call_operand.vmem [shape: s32[1,1,8], index: 1, kind: input, shape index: {}]
  %s2 = inlined_call_operand.vmem [shape: s32[1,8,1], index: 2, kind: input, shape index: {}]
  %s3 = inlined_call_operand.vmem [shape: f32[12,32,8], index: 3, kind: input, shape index: {}]
  %s4 = inlined_call_operand.vmem [shape: f32[12,1,8], index: 4, kind: input, shape index: {}]
  %s5 = inlined_call_operand.vmem [shape: f32[4,8,32], index: 5, kind: input, shape index: {}]
  %s6 = inlined_call_operand.vmem [shape: f32[4,32], index: 6, kind: input, shape index: {}]
  %s7 = inlined_call_operand.vmem [shape: f32[1,8,512], index: 7, kind: input, shape index: {}]
  %s8 = inlined_call_operand.hbm [shape: f32[1,8,640], index: 8, kind: output, shape index: {}]
  %s9 = sld [smem:[#allocation0]]
  $region42: #{tpu_custom_call.1} parent=0
    _
  %s11 = ssub.s32 1, %s9
  %s12 = scalar_select 0, %s11, %s9
  $region1: #{tpu_custom_call.1} parent=0
    #allocation2 [shape = 'u8[20480]{0}', space=vmem, size = 0x5000, scoped, tag = 'output window, operand 0, single buffered']
    #allocation3 [shape = 's32[1]{0}', space=sflag, size = 0x4, scoped, tag = 'scoped memory for tpu_custom_call.1']
    %13 = vsyncpa [#allocation3], 0
    // Predicated region
    $region2: #{tpu_custom_call.1} parent=1 // pred_check
      _
    $region3: #{tpu_custom_call.1} parent=1 // pred_check_branch
      %15 = sbr.rel (0) target = $region5
    $region4: #{tpu_custom_call.1} parent=1 // pred_region
      _
    $region5: #{tpu_custom_call.1} parent=1 // pred_fallthru
      _
    // Predicated region
    $region6: #{tpu_custom_call.1} parent=1 // pred_check
      _
    $region7: #{tpu_custom_call.1} parent=1 // pred_check_branch
      %17 = sbr.rel (0) target = $region9
    $region8: #{tpu_custom_call.1} parent=1 // pred_region
      _
    $region9: #{tpu_custom_call.1} parent=1 // pred_fallthru
      _
    // Predicated region
    $region10: #{tpu_custom_call.1} parent=1 // pred_check
      _
    $region11: #{tpu_custom_call.1} parent=1 // pred_check_branch
      %19 = sbr.rel (0) target = $region13
    $region12: #{tpu_custom_call.1} parent=1 // pred_region
      _
    $region13: #{tpu_custom_call.1} parent=1 // pred_fallthru
      _
    // Predicated region
    $region14: #{tpu_custom_call.1} parent=1 // pred_check
      _
    $region15: #{tpu_custom_call.1} parent=1 // pred_check_branch
      %21 = sbr.rel (0) target = $region17
    $region16: #{tpu_custom_call.1} parent=1 // pred_region
      _
    $region17: #{tpu_custom_call.1} parent=1 // pred_fallthru
      _
    // Predicated region
    $region18: #{tpu_custom_call.1} parent=1 // pred_check
      _
    $region19: #{tpu_custom_call.1} parent=1 // pred_check_branch
      %23 = sbr.rel (0) target = $region21
    $region20: #{tpu_custom_call.1} parent=1 // pred_region
      _
    $region21: #{tpu_custom_call.1} parent=1 // pred_fallthru
      _
    // Predicated region
    $region22: #{tpu_custom_call.1} parent=1 // pred_check
      _
    $region23: #{tpu_custom_call.1} parent=1 // pred_check_branch
      %25 = sbr.rel (0) target = $region25
    $region24: #{tpu_custom_call.1} parent=1 // pred_region
      _
    $region25: #{tpu_custom_call.1} parent=1 // pred_fallthru
      _
    // Predicated region
    $region26: #{tpu_custom_call.1} parent=1 // pred_check
      _
    $region27: #{tpu_custom_call.1} parent=1 // pred_check_branch
      %27 = sbr.rel (0) target = $region29
    $region28: #{tpu_custom_call.1} parent=1 // pred_region
      _
    $region29: #{tpu_custom_call.1} parent=1 // pred_fallthru
      _
    // Predicated region
    $region30: #{tpu_custom_call.1} parent=1 // pred_check
      _
    $region31: #{tpu_custom_call.1} parent=1 // pred_check_branch
      %29 = sbr.rel (0) target = $region33
    $region32: #{tpu_custom_call.1} parent=1 // pred_region
      _
    $region33: #{tpu_custom_call.1} parent=1 // pred_fallthru
      _
    %v30 = vld [vmem:[%s0] sm:$0xff]
    %v31 = vld [vmem:[%s2] sm:$0xff]
    %v32 = vld [vmem:[%s1] sm:$0x1]
    %33 = vset.pattern.permute.xlu0 0
    %34 = vperm.xlu0 %33, %v31
    %v35 = vpop.permute.xlu0 %34
    %v36 = vlaneseq
    %v37 = vshrl.u32 %v36, 7
    %v38 = vsub.s32 0, %v37
    %v39 = vrot.slane %v32, %v38
    %vm40 = vcmp.ne.s32.totalorder %v35, %v39
    %v41 = vsel %vm40, -1e+30, 0.0
    %v42 = vld [vmem:[%s3] sm:$0xff]
    %v43 = vld [vmem:[%s3 + $0x8] sm:$0xff]
    %v44 = vld [vmem:[%s3 + $0x10] sm:$0xff]
    %v45 = vld [vmem:[%s3 + $0x18] sm:$0xff]
    %v46 = vld [vmem:[%s3 + $0x20] sm:$0xff]
    %v47 = vld [vmem:[%s3 + $0x28] sm:$0xff]
    %v48 = vld [vmem:[%s3 + $0x30] sm:$0xff]
    %v49 = vld [vmem:[%s3 + $0x38] sm:$0xff]
    %v50 = vld [vmem:[%s3 + $0x40] sm:$0xff]
    %v51 = vld [vmem:[%s3 + $0x48] sm:$0xff]
    %v52 = vld [vmem:[%s3 + $0x50] sm:$0xff]
    %v53 = vld [vmem:[%s3 + $0x58] sm:$0xff]
    %v54 = vld [vmem:[%s3 + $0x60] sm:$0xff]
    %v55 = vld [vmem:[%s3 + $0x68] sm:$0xff]
    %v56 = vld [vmem:[%s3 + $0x70] sm:$0xff]
    %v57 = vld [vmem:[%s3 + $0x78] sm:$0xff]
    %v58 = vld [vmem:[%s3 + $0x80] sm:$0xff]
    %v59 = vld [vmem:[%s3 + $0x88] sm:$0xff]
    %v60 = vld [vmem:[%s3 + $0x90] sm:$0xff]
    %v61 = vld [vmem:[%s3 + $0x98] sm:$0xff]
    %v62 = vld [vmem:[%s3 + $0xa0] sm:$0xff]
    %v63 = vld [vmem:[%s3 + $0xa8] sm:$0xff]
    %v64 = vld [vmem:[%s3 + $0xb0] sm:$0xff]
    %v65 = vld [vmem:[%s3 + $0xb8] sm:$0xff]
    %v66 = vld [vmem:[%s3 + $0xc0] sm:$0xff]
    %v67 = vld [vmem:[%s3 + $0xc8] sm:$0xff]
    %v68 = vld [vmem:[%s3 + $0xd0] sm:$0xff]
    %v69 = vld [vmem:[%s3 + $0xd8] sm:$0xff]
    %v70 = vld [vmem:[%s3 + $0xe0] sm:$0xff]
    %v71 = vld [vmem:[%s3 + $0xe8] sm:$0xff]
    %v72 = vld [vmem:[%s3 + $0xf0] sm:$0xff]
    %v73 = vld [vmem:[%s3 + $0xf8] sm:$0xff]
    %v74 = vld [vmem:[%s3 + $0x100] sm:$0xff]
    %v75 = vld [vmem:[%s3 + $0x108] sm:$0xff]
    %v76 = vld [vmem:[%s3 + $0x110] sm:$0xff]
    %v77 = vld [vmem:[%s3 + $0x118] sm:$0xff]
    %v78 = vld [vmem:[%s3 + $0x120] sm:$0xff]
    %v79 = vld [vmem:[%s3 + $0x128] sm:$0xff]
    %v80 = vld [vmem:[%s3 + $0x130] sm:$0xff]
    %v81 = vld [vmem:[%s3 + $0x138] sm:$0xff]
    %v82 = vld [vmem:[%s3 + $0x140] sm:$0xff]
    %v83 = vld [vmem:[%s3 + $0x148] sm:$0xff]
    %v84 = vld [vmem:[%s3 + $0x150] sm:$0xff]
    %v85 = vld [vmem:[%s3 + $0x158] sm:$0xff]
    %v86 = vld [vmem:[%s3 + $0x160] sm:$0xff]
    %v87 = vld [vmem:[%s3 + $0x168] sm:$0xff]
    %v88 = vld [vmem:[%s3 + $0x170] sm:$0xff]
    %v89 = vld [vmem:[%s3 + $0x178] sm:$0xff]
    %v90 = vld [vmem:[%s4] sm:$0x1]
    %v91 = vld [vmem:[%s4 + $0x1] sm:$0x1]
    %v92 = vld [vmem:[%s4 + $0x2] sm:$0x1]
    %v93 = vld [vmem:[%s4 + $0x3] sm:$0x1]
    %v94 = vld [vmem:[%s4 + $0x4] sm:$0x1]
    %v95 = vld [vmem:[%s4 + $0x5] sm:$0x1]
    %v96 = vld [vmem:[%s4 + $0x6] sm:$0x1]
    %v97 = vld [vmem:[%s4 + $0x7] sm:$0x1]
    %v98 = vld [vmem:[%s4 + $0x8] sm:$0x1]
    %v99 = vld [vmem:[%s4 + $0x9] sm:$0x1]
    %v100 = vld [vmem:[%s4 + $0xa] sm:$0x1]
    %v101 = vld [vmem:[%s4 + $0xb] sm:$0x1]
    %v114 = vlaneseq
    %v115 = vshrl.u32 %v114, 7
    %v116 = vsub.s32 0, %v115
    %v117 = vrot.slane %v90, %v116
    %v118 = vlaneseq
    %v119 = vshrl.u32 %v118, 7
    %v120 = vsub.s32 0, %v119
    %v121 = vrot.slane %v91, %v120
    %v122 = vlaneseq
    %v123 = vshrl.u32 %v122, 7
    %v124 = vsub.s32 0, %v123
    %v125 = vrot.slane %v92, %v124
    %v126 = vlaneseq
    %v127 = vshrl.u32 %v126, 7
    %v128 = vsub.s32 0, %v127
    %v129 = vrot.slane %v93, %v128
    %v130 = vlaneseq
    %v131 = vshrl.u32 %v130, 7
    %v132 = vsub.s32 0, %v131
    %v133 = vrot.slane %v94, %v132
    %v134 = vlaneseq
    %v135 = vshrl.u32 %v134, 7
    %v136 = vsub.s32 0, %v135
    %v137 = vrot.slane %v95, %v136
    %v138 = vlaneseq
    %v139 = vshrl.u32 %v138, 7
    %v140 = vsub.s32 0, %v139
    %v141 = vrot.slane %v96, %v140
    %v142 = vlaneseq
    %v143 = vshrl.u32 %v142, 7
    %v144 = vsub.s32 0, %v143
    %v145 = vrot.slane %v97, %v144
    %v146 = vlaneseq
    %v147 = vshrl.u32 %v146, 7
    %v148 = vsub.s32 0, %v147
    %v149 = vrot.slane %v98, %v148
    %v150 = vlaneseq
    %v151 = vshrl.u32 %v150, 7
    %v152 = vsub.s32 0, %v151
    %v153 = vrot.slane %v99, %v152
    %v154 = vlaneseq
    %v155 = vshrl.u32 %v154, 7
    %v156 = vsub.s32 0, %v155
    %v157 = vrot.slane %v100, %v156
    %v158 = vlaneseq
    %v159 = vshrl.u32 %v158, 7
    %v160 = vsub.s32 0, %v159
    %v161 = vrot.slane %v101, %v160
    %vm174 = vcmask 261120
    %v176 = vsel %vm174, %v30, 0
    %178 = vmatprep.subr.mxu0 0.0
    %179 = vmatpush1.msra.mxu0 %v42
    %180 = vmatprep.subr.mxu0 0.0
    %181 = vmatpush1.msra.mxu0 %v43
    %182 = vmatprep.subr.mxu0 0.0
    %183 = vmatpush1.msra.mxu0 %v44
    %184 = vmatprep.subr.mxu0 0.0
    %185 = vmatpush1.msra.mxu0 %v45
    %186 = vmatprep.subr.mxu0 0.0
    %187 = vmatpush1.msra.mxu0 0.0
    %188 = vmatprep.subr.mxu0 0.0
    %189 = vmatpush1.msra.mxu0 0.0
    %190 = vmatprep.subr.mxu0 0.0
    %191 = vmatpush1.msra.mxu0 0.0
    %192 = vmatprep.subr.mxu0 0.0
    %193 = vmatpush1.msra.mxu0 0.0
    %194 = vmatprep.subr.mxu0 0.0
    %195 = vmatpush1.msra.mxu0 0.0
    %196 = vmatprep.subr.mxu0 0.0
    %197 = vmatpush1.msra.mxu0 0.0
    %198 = vmatprep.subr.mxu0 0.0
    %199 = vmatpush1.msra.mxu0 0.0
    %200 = vmatprep.subr.mxu0 0.0
    %201 = vmatpush1.msra.mxu0 0.0
    %202 = vmatprep.subr.mxu0 0.0
    %203 = vmatpush1.msra.mxu0 0.0
    %204 = vmatprep.subr.mxu0 0.0
    %205 = vmatpush1.msra.mxu0 0.0
    %206 = vmatprep.subr.mxu0 0.0
    %207 = vmatpush1.msra.mxu0 0.0
    %208 = vmatprep.subr.mxu0 0.0
    %209 = vmatpush1.msra.mxu0 0.0
    %210 = vmatprep.subr.mxu0 0.0
    %211 = vmatpush1.msra.mxu0 0.0
    %212 = vmatprep.subr.mxu0 0.0
    %213 = vmatpush1.msra.mxu0 0.0
    %214 = vmatprep.subr.mxu0 0.0
    %215 = vmatpush1.msra.mxu0 0.0
    %216 = vmatprep.subr.mxu0 0.0
    %217 = vmatpush1.msra.mxu0 0.0
    %218 = vmatprep.subr.mxu0 0.0
    %219 = vmatpush1.msra.mxu0 0.0
    %220 = vmatprep.subr.mxu0 0.0
    %221 = vmatpush1.msra.mxu0 0.0
    %222 = vmatprep.subr.mxu0 0.0
    %223 = vmatpush1.msra.mxu0 0.0
    %224 = vmatprep.subr.mxu0 0.0
    %225 = vmatpush1.msra.mxu0 0.0
    %226 = vmatprep.subr.mxu0 0.0
    %227 = vmatpush1.msra.mxu0 0.0
    %228 = vmatprep.subr.mxu0 0.0
    %229 = vmatpush1.msra.mxu0 0.0
    %230 = vmatprep.subr.mxu0 0.0
    %231 = vmatpush1.msra.mxu0 0.0
    %232 = vmatprep.subr.mxu0 0.0
    %233 = vmatpush1.msra.mxu0 0.0
    %234 = vmatprep.subr.mxu0 0.0
    %235 = vmatpush1.msra.mxu0 0.0
    %236 = vmatprep.subr.mxu0 0.0
    %237 = vmatpush1.msra.mxu0 0.0
    %238 = vmatprep.subr.mxu0 0.0
    %239 = vmatpush1.msra.mxu0 0.0
    %240 = vmatprep.subr.mxu0 0.0
    %241 = vmatpush1.msra.mxu0 0.0
    %242 = vmatprep.mubr.f32.mxu0 0.0
    %243 = vmatmul.mubr.f32.gmra.mrb[0].mxu0 %v176
    %v244 = vpop.f32.mrb[0].mxu0
    %v245 = vadd.f32 %v117, %v244
    %v246 = vpop.f32.mrb[0].mxu0
    %247 = vdwg.mxu0
    %248 = vmatprep.subr.mxu0 0.0
    %249 = vmatpush1.msra.mxu0 %v46
    %250 = vmatprep.subr.mxu0 0.0
    %251 = vmatpush1.msra.mxu0 %v47
    %252 = vmatprep.subr.mxu0 0.0
    %253 = vmatpush1.msra.mxu0 %v48
    %254 = vmatprep.subr.mxu0 0.0
    %255 = vmatpush1.msra.mxu0 %v49
    %256 = vmatprep.subr.mxu0 0.0
    %257 = vmatpush1.msra.mxu0 0.0
    %258 = vmatprep.subr.mxu0 0.0
    %259 = vmatpush1.msra.mxu0 0.0
    %260 = vmatprep.subr.mxu0 0.0
    %261 = vmatpush1.msra.mxu0 0.0
    %262 = vmatprep.subr.mxu0 0.0
    %263 = vmatpush1.msra.mxu0 0.0
    %264 = vmatprep.subr.mxu0 0.0
    %265 = vmatpush1.msra.mxu0 0.0
    %266 = vmatprep.subr.mxu0 0.0
    %267 = vmatpush1.msra.mxu0 0.0
    %268 = vmatprep.subr.mxu0 0.0
    %269 = vmatpush1.msra.mxu0 0.0
    %270 = vmatprep.subr.mxu0 0.0
    %271 = vmatpush1.msra.mxu0 0.0
    %272 = vmatprep.subr.mxu0 0.0
    %273 = vmatpush1.msra.mxu0 0.0
    %274 = vmatprep.subr.mxu0 0.0
    %275 = vmatpush1.msra.mxu0 0.0
    %276 = vmatprep.subr.mxu0 0.0
    %277 = vmatpush1.msra.mxu0 0.0
    %278 = vmatprep.subr.mxu0 0.0
    %279 = vmatpush1.msra.mxu0 0.0
    %280 = vmatprep.subr.mxu0 0.0
    %281 = vmatpush1.msra.mxu0 0.0
    %282 = vmatprep.subr.mxu0 0.0
    %283 = vmatpush1.msra.mxu0 0.0
    %284 = vmatprep.subr.mxu0 0.0
    %285 = vmatpush1.msra.mxu0 0.0
    %286 = vmatprep.subr.mxu0 0.0
    %287 = vmatpush1.msra.mxu0 0.0
    %288 = vmatprep.subr.mxu0 0.0
    %289 = vmatpush1.msra.mxu0 0.0
    %290 = vmatprep.subr.mxu0 0.0
    %291 = vmatpush1.msra.mxu0 0.0
    %292 = vmatprep.subr.mxu0 0.0
    %293 = vmatpush1.msra.mxu0 0.0
    %294 = vmatprep.subr.mxu0 0.0
    %295 = vmatpush1.msra.mxu0 0.0
    %296 = vmatprep.subr.mxu0 0.0
    %297 = vmatpush1.msra.mxu0 0.0
    %298 = vmatprep.subr.mxu0 0.0
    %299 = vmatpush1.msra.mxu0 0.0
    %300 = vmatprep.subr.mxu0 0.0
    %301 = vmatpush1.msra.mxu0 0.0
    %302 = vmatprep.subr.mxu0 0.0
    %303 = vmatpush1.msra.mxu0 0.0
    %304 = vmatprep.subr.mxu0 0.0
    %305 = vmatpush1.msra.mxu0 0.0
    %306 = vmatprep.subr.mxu0 0.0
    %307 = vmatpush1.msra.mxu0 0.0
    %308 = vmatprep.subr.mxu0 0.0
    %309 = vmatpush1.msra.mxu0 0.0
    %310 = vmatprep.subr.mxu0 0.0
    %311 = vmatpush1.msra.mxu0 0.0
    %312 = vmatprep.mubr.f32.mxu0 0.0
    %313 = vmatmul.mubr.f32.gmra.mrb[0].mxu0 %v176
    %v314 = vpop.f32.mrb[0].mxu0
    %v315 = vadd.f32 %v121, %v314
    %v316 = vpop.f32.mrb[0].mxu0
    %317 = vdwg.mxu0
    %318 = vmatprep.subr.mxu0 0.0
    %319 = vmatpush1.msra.mxu0 %v50
    %320 = vmatprep.subr.mxu0 0.0
    %321 = vmatpush1.msra.mxu0 %v51
    %322 = vmatprep.subr.mxu0 0.0
    %323 = vmatpush1.msra.mxu0 %v52
    %324 = vmatprep.subr.mxu0 0.0
    %325 = vmatpush1.msra.mxu0 %v53
    %326 = vmatprep.subr.mxu0 0.0
    %327 = vmatpush1.msra.mxu0 0.0
    %328 = vmatprep.subr.mxu0 0.0
    %329 = vmatpush1.msra.mxu0 0.0
    %330 = vmatprep.subr.mxu0 0.0
    %331 = vmatpush1.msra.mxu0 0.0
    %332 = vmatprep.subr.mxu0 0.0
    %333 = vmatpush1.msra.mxu0 0.0
    %334 = vmatprep.subr.mxu0 0.0
    %335 = vmatpush1.msra.mxu0 0.0
    %336 = vmatprep.subr.mxu0 0.0
    %337 = vmatpush1.msra.mxu0 0.0
    %338 = vmatprep.subr.mxu0 0.0
    %339 = vmatpush1.msra.mxu0 0.0
    %340 = vmatprep.subr.mxu0 0.0
    %341 = vmatpush1.msra.mxu0 0.0
    %342 = vmatprep.subr.mxu0 0.0
    %343 = vmatpush1.msra.mxu0 0.0
    %344 = vmatprep.subr.mxu0 0.0
    %345 = vmatpush1.msra.mxu0 0.0
    %346 = vmatprep.subr.mxu0 0.0
    %347 = vmatpush1.msra.mxu0 0.0
    %348 = vmatprep.subr.mxu0 0.0
    %349 = vmatpush1.msra.mxu0 0.0
    %350 = vmatprep.subr.mxu0 0.0
    %351 = vmatpush1.msra.mxu0 0.0
    %352 = vmatprep.subr.mxu0 0.0
    %353 = vmatpush1.msra.mxu0 0.0
    %354 = vmatprep.subr.mxu0 0.0
    %355 = vmatpush1.msra.mxu0 0.0
    %356 = vmatprep.subr.mxu0 0.0
    %357 = vmatpush1.msra.mxu0 0.0
    %358 = vmatprep.subr.mxu0 0.0
    %359 = vmatpush1.msra.mxu0 0.0
    %360 = vmatprep.subr.mxu0 0.0
    %361 = vmatpush1.msra.mxu0 0.0
    %362 = vmatprep.subr.mxu0 0.0
    %363 = vmatpush1.msra.mxu0 0.0
    %364 = vmatprep.subr.mxu0 0.0
    %365 = vmatpush1.msra.mxu0 0.0
    %366 = vmatprep.subr.mxu0 0.0
    %367 = vmatpush1.msra.mxu0 0.0
    %368 = vmatprep.subr.mxu0 0.0
    %369 = vmatpush1.msra.mxu0 0.0
    %370 = vmatprep.subr.mxu0 0.0
    %371 = vmatpush1.msra.mxu0 0.0
    %372 = vmatprep.subr.mxu0 0.0
    %373 = vmatpush1.msra.mxu0 0.0
    %374 = vmatprep.subr.mxu0 0.0
    %375 = vmatpush1.msra.mxu0 0.0
    %376 = vmatprep.subr.mxu0 0.0
    %377 = vmatpush1.msra.mxu0 0.0
    %378 = vmatprep.subr.mxu0 0.0
    %379 = vmatpush1.msra.mxu0 0.0
    %380 = vmatprep.subr.mxu0 0.0
    %381 = vmatpush1.msra.mxu0 0.0
    %382 = vmatprep.mubr.f32.mxu0 0.0
    %383 = vmatmul.mubr.f32.gmra.mrb[0].mxu0 %v176
    %v384 = vpop.f32.mrb[0].mxu0
    %v385 = vadd.f32 %v125, %v384
    %v386 = vpop.f32.mrb[0].mxu0
    %387 = vdwg.mxu0
    %388 = vmatprep.subr.mxu0 0.0
    %389 = vmatpush1.msra.mxu0 %v54
    %390 = vmatprep.subr.mxu0 0.0
    %391 = vmatpush1.msra.mxu0 %v55
    %392 = vmatprep.subr.mxu0 0.0
    %393 = vmatpush1.msra.mxu0 %v56
    %394 = vmatprep.subr.mxu0 0.0
    %395 = vmatpush1.msra.mxu0 %v57
    %396 = vmatprep.subr.mxu0 0.0
    %397 = vmatpush1.msra.mxu0 0.0
    %398 = vmatprep.subr.mxu0 0.0
    %399 = vmatpush1.msra.mxu0 0.0
    %400 = vmatprep.subr.mxu0 0.0
    %401 = vmatpush1.msra.mxu0 0.0
    %402 = vmatprep.subr.mxu0 0.0
    %403 = vmatpush1.msra.mxu0 0.0
    %404 = vmatprep.subr.mxu0 0.0
    %405 = vmatpush1.msra.mxu0 0.0
    %406 = vmatprep.subr.mxu0 0.0
    %407 = vmatpush1.msra.mxu0 0.0
    %408 = vmatprep.subr.mxu0 0.0
    %409 = vmatpush1.msra.mxu0 0.0
    %410 = vmatprep.subr.mxu0 0.0
    %411 = vmatpush1.msra.mxu0 0.0
    %412 = vmatprep.subr.mxu0 0.0
    %413 = vmatpush1.msra.mxu0 0.0
    %414 = vmatprep.subr.mxu0 0.0
    %415 = vmatpush1.msra.mxu0 0.0
    %416 = vmatprep.subr.mxu0 0.0
    %417 = vmatpush1.msra.mxu0 0.0
    %418 = vmatprep.subr.mxu0 0.0
    %419 = vmatpush1.msra.mxu0 0.0
    %420 = vmatprep.subr.mxu0 0.0
    %421 = vmatpush1.msra.mxu0 0.0
    %422 = vmatprep.subr.mxu0 0.0
    %423 = vmatpush1.msra.mxu0 0.0
    %424 = vmatprep.subr.mxu0 0.0
    %425 = vmatpush1.msra.mxu0 0.0
    %426 = vmatprep.subr.mxu0 0.0
    %427 = vmatpush1.msra.mxu0 0.0
    %428 = vmatprep.subr.mxu0 0.0
    %429 = vmatpush1.msra.mxu0 0.0
    %430 = vmatprep.subr.mxu0 0.0
    %431 = vmatpush1.msra.mxu0 0.0
    %432 = vmatprep.subr.mxu0 0.0
    %433 = vmatpush1.msra.mxu0 0.0
    %434 = vmatprep.subr.mxu0 0.0
    %435 = vmatpush1.msra.mxu0 0.0
    %436 = vmatprep.subr.mxu0 0.0
    %437 = vmatpush1.msra.mxu0 0.0
    %438 = vmatprep.subr.mxu0 0.0
    %439 = vmatpush1.msra.mxu0 0.0
    %440 = vmatprep.subr.mxu0 0.0
    %441 = vmatpush1.msra.mxu0 0.0
    %442 = vmatprep.subr.mxu0 0.0
    %443 = vmatpush1.msra.mxu0 0.0
    %444 = vmatprep.subr.mxu0 0.0
    %445 = vmatpush1.msra.mxu0 0.0
    %446 = vmatprep.subr.mxu0 0.0
    %447 = vmatpush1.msra.mxu0 0.0
    %448 = vmatprep.subr.mxu0 0.0
    %449 = vmatpush1.msra.mxu0 0.0
    %450 = vmatprep.subr.mxu0 0.0
    %451 = vmatpush1.msra.mxu0 0.0
    %452 = vmatprep.mubr.f32.mxu0 0.0
    %453 = vmatmul.mubr.f32.gmra.mrb[0].mxu0 %v176
    %v454 = vpop.f32.mrb[0].mxu0
    %v455 = vadd.f32 %v129, %v454
    %v456 = vpop.f32.mrb[0].mxu0
    %457 = vdwg.mxu0
    %458 = vmatprep.subr.mxu0 0.0
    %459 = vmatpush1.msra.mxu0 %v58
    %460 = vmatprep.subr.mxu0 0.0
    %461 = vmatpush1.msra.mxu0 %v59
    %462 = vmatprep.subr.mxu0 0.0
    %463 = vmatpush1.msra.mxu0 %v60
    %464 = vmatprep.subr.mxu0 0.0
    %465 = vmatpush1.msra.mxu0 %v61
    %466 = vmatprep.subr.mxu0 0.0
    %467 = vmatpush1.msra.mxu0 0.0
    %468 = vmatprep.subr.mxu0 0.0
    %469 = vmatpush1.msra.mxu0 0.0
    %470 = vmatprep.subr.mxu0 0.0
    %471 = vmatpush1.msra.mxu0 0.0
    %472 = vmatprep.subr.mxu0 0.0
    %473 = vmatpush1.msra.mxu0 0.0
    %474 = vmatprep.subr.mxu0 0.0
    %475 = vmatpush1.msra.mxu0 0.0
    %476 = vmatprep.subr.mxu0 0.0
    %477 = vmatpush1.msra.mxu0 0.0
    %478 = vmatprep.subr.mxu0 0.0
    %479 = vmatpush1.msra.mxu0 0.0
    %480 = vmatprep.subr.mxu0 0.0
    %481 = vmatpush1.msra.mxu0 0.0
    %482 = vmatprep.subr.mxu0 0.0
    %483 = vmatpush1.msra.mxu0 0.0
    %484 = vmatprep.subr.mxu0 0.0
    %485 = vmatpush1.msra.mxu0 0.0
    %486 = vmatprep.subr.mxu0 0.0
    %487 = vmatpush1.msra.mxu0 0.0
    %488 = vmatprep.subr.mxu0 0.0
    %489 = vmatpush1.msra.mxu0 0.0
    %490 = vmatprep.subr.mxu0 0.0
    %491 = vmatpush1.msra.mxu0 0.0
    %492 = vmatprep.subr.mxu0 0.0
    %493 = vmatpush1.msra.mxu0 0.0
    %494 = vmatprep.subr.mxu0 0.0
    %495 = vmatpush1.msra.mxu0 0.0
    %496 = vmatprep.subr.mxu0 0.0
    %497 = vmatpush1.msra.mxu0 0.0
    %498 = vmatprep.subr.mxu0 0.0
    %499 = vmatpush1.msra.mxu0 0.0
    %500 = vmatprep.subr.mxu0 0.0
    %501 = vmatpush1.msra.mxu0 0.0
    %502 = vmatprep.subr.mxu0 0.0
    %503 = vmatpush1.msra.mxu0 0.0
    %504 = vmatprep.subr.mxu0 0.0
    %505 = vmatpush1.msra.mxu0 0.0
    %506 = vmatprep.subr.mxu0 0.0
    %507 = vmatpush1.msra.mxu0 0.0
    %508 = vmatprep.subr.mxu0 0.0
    %509 = vmatpush1.msra.mxu0 0.0
    %510 = vmatprep.subr.mxu0 0.0
    %511 = vmatpush1.msra.mxu0 0.0
    %512 = vmatprep.subr.mxu0 0.0
    %513 = vmatpush1.msra.mxu0 0.0
    %514 = vmatprep.subr.mxu0 0.0
    %515 = vmatpush1.msra.mxu0 0.0
    %516 = vmatprep.subr.mxu0 0.0
    %517 = vmatpush1.msra.mxu0 0.0
    %518 = vmatprep.subr.mxu0 0.0
    %519 = vmatpush1.msra.mxu0 0.0
    %520 = vmatprep.subr.mxu0 0.0
    %521 = vmatpush1.msra.mxu0 0.0
    %522 = vmatprep.mubr.f32.mxu0 0.0
    %523 = vmatmul.mubr.f32.gmra.mrb[0].mxu0 %v176
    %v524 = vpop.f32.mrb[0].mxu0
    %v525 = vadd.f32 %v133, %v524
    %v526 = vpop.f32.mrb[0].mxu0
    %527 = vdwg.mxu0
    %528 = vmatprep.subr.mxu0 0.0
    %529 = vmatpush1.msra.mxu0 %v62
    %530 = vmatprep.subr.mxu0 0.0
    %531 = vmatpush1.msra.mxu0 %v63
    %532 = vmatprep.subr.mxu0 0.0
    %533 = vmatpush1.msra.mxu0 %v64
    %534 = vmatprep.subr.mxu0 0.0
    %535 = vmatpush1.msra.mxu0 %v65
    %536 = vmatprep.subr.mxu0 0.0
    %537 = vmatpush1.msra.mxu0 0.0
    %538 = vmatprep.subr.mxu0 0.0
    %539 = vmatpush1.msra.mxu0 0.0
    %540 = vmatprep.subr.mxu0 0.0
    %541 = vmatpush1.msra.mxu0 0.0
    %542 = vmatprep.subr.mxu0 0.0
    %543 = vmatpush1.msra.mxu0 0.0
    %544 = vmatprep.subr.mxu0 0.0
    %545 = vmatpush1.msra.mxu0 0.0
    %546 = vmatprep.subr.mxu0 0.0
    %547 = vmatpush1.msra.mxu0 0.0
    %548 = vmatprep.subr.mxu0 0.0
    %549 = vmatpush1.msra.mxu0 0.0
    %550 = vmatprep.subr.mxu0 0.0
    %551 = vmatpush1.msra.mxu0 0.0
    %552 = vmatprep.subr.mxu0 0.0
    %553 = vmatpush1.msra.mxu0 0.0
    %554 = vmatprep.subr.mxu0 0.0
    %555 = vmatpush1.msra.mxu0 0.0
    %556 = vmatprep.subr.mxu0 0.0
    %557 = vmatpush1.msra.mxu0 0.0
    %558 = vmatprep.subr.mxu0 0.0
    %559 = vmatpush1.msra.mxu0 0.0
    %560 = vmatprep.subr.mxu0 0.0
    %561 = vmatpush1.msra.mxu0 0.0
    %562 = vmatprep.subr.mxu0 0.0
    %563 = vmatpush1.msra.mxu0 0.0
    %564 = vmatprep.subr.mxu0 0.0
    %565 = vmatpush1.msra.mxu0 0.0
    %566 = vmatprep.subr.mxu0 0.0
    %567 = vmatpush1.msra.mxu0 0.0
    %568 = vmatprep.subr.mxu0 0.0
    %569 = vmatpush1.msra.mxu0 0.0
    %570 = vmatprep.subr.mxu0 0.0
    %571 = vmatpush1.msra.mxu0 0.0
    %572 = vmatprep.subr.mxu0 0.0
    %573 = vmatpush1.msra.mxu0 0.0
    %574 = vmatprep.subr.mxu0 0.0
    %575 = vmatpush1.msra.mxu0 0.0
    %576 = vmatprep.subr.mxu0 0.0
    %577 = vmatpush1.msra.mxu0 0.0
    %578 = vmatprep.subr.mxu0 0.0
    %579 = vmatpush1.msra.mxu0 0.0
    %580 = vmatprep.subr.mxu0 0.0
    %581 = vmatpush1.msra.mxu0 0.0
    %582 = vmatprep.subr.mxu0 0.0
    %583 = vmatpush1.msra.mxu0 0.0
    %584 = vmatprep.subr.mxu0 0.0
    %585 = vmatpush1.msra.mxu0 0.0
    %586 = vmatprep.subr.mxu0 0.0
    %587 = vmatpush1.msra.mxu0 0.0
    %588 = vmatprep.subr.mxu0 0.0
    %589 = vmatpush1.msra.mxu0 0.0
    %590 = vmatprep.subr.mxu0 0.0
    %591 = vmatpush1.msra.mxu0 0.0
    %592 = vmatprep.mubr.f32.mxu0 0.0
    %593 = vmatmul.mubr.f32.gmra.mrb[0].mxu0 %v176
    %v594 = vpop.f32.mrb[0].mxu0
    %v595 = vadd.f32 %v137, %v594
    %v596 = vpop.f32.mrb[0].mxu0
    %597 = vdwg.mxu0
    %598 = vmatprep.subr.mxu0 0.0
    %599 = vmatpush1.msra.mxu0 %v66
    %600 = vmatprep.subr.mxu0 0.0
    %601 = vmatpush1.msra.mxu0 %v67
    %602 = vmatprep.subr.mxu0 0.0
    %603 = vmatpush1.msra.mxu0 %v68
    %604 = vmatprep.subr.mxu0 0.0
    %605 = vmatpush1.msra.mxu0 %v69
    %606 = vmatprep.subr.mxu0 0.0
    %607 = vmatpush1.msra.mxu0 0.0
    %608 = vmatprep.subr.mxu0 0.0
    %609 = vmatpush1.msra.mxu0 0.0
    %610 = vmatprep.subr.mxu0 0.0
    %611 = vmatpush1.msra.mxu0 0.0
    %612 = vmatprep.subr.mxu0 0.0
    %613 = vmatpush1.msra.mxu0 0.0
    %614 = vmatprep.subr.mxu0 0.0
    %615 = vmatpush1.msra.mxu0 0.0
    %616 = vmatprep.subr.mxu0 0.0
    %617 = vmatpush1.msra.mxu0 0.0
    %618 = vmatprep.subr.mxu0 0.0
    %619 = vmatpush1.msra.mxu0 0.0
    %620 = vmatprep.subr.mxu0 0.0
    %621 = vmatpush1.msra.mxu0 0.0
    %622 = vmatprep.subr.mxu0 0.0
    %623 = vmatpush1.msra.mxu0 0.0
    %624 = vmatprep.subr.mxu0 0.0
    %625 = vmatpush1.msra.mxu0 0.0
    %626 = vmatprep.subr.mxu0 0.0
    %627 = vmatpush1.msra.mxu0 0.0
    %628 = vmatprep.subr.mxu0 0.0
    %629 = vmatpush1.msra.mxu0 0.0
    %630 = vmatprep.subr.mxu0 0.0
    %631 = vmatpush1.msra.mxu0 0.0
    %632 = vmatprep.subr.mxu0 0.0
    %633 = vmatpush1.msra.mxu0 0.0
    %634 = vmatprep.subr.mxu0 0.0
    %635 = vmatpush1.msra.mxu0 0.0
    %636 = vmatprep.subr.mxu0 0.0
    %637 = vmatpush1.msra.mxu0 0.0
    %638 = vmatprep.subr.mxu0 0.0
    %639 = vmatpush1.msra.mxu0 0.0
    %640 = vmatprep.subr.mxu0 0.0
    %641 = vmatpush1.msra.mxu0 0.0
    %642 = vmatprep.subr.mxu0 0.0
    %643 = vmatpush1.msra.mxu0 0.0
    %644 = vmatprep.subr.mxu0 0.0
    %645 = vmatpush1.msra.mxu0 0.0
    %646 = vmatprep.subr.mxu0 0.0
    %647 = vmatpush1.msra.mxu0 0.0
    %648 = vmatprep.subr.mxu0 0.0
    %649 = vmatpush1.msra.mxu0 0.0
    %650 = vmatprep.subr.mxu0 0.0
    %651 = vmatpush1.msra.mxu0 0.0
    %652 = vmatprep.subr.mxu0 0.0
    %653 = vmatpush1.msra.mxu0 0.0
    %654 = vmatprep.subr.mxu0 0.0
    %655 = vmatpush1.msra.mxu0 0.0
    %656 = vmatprep.subr.mxu0 0.0
    %657 = vmatpush1.msra.mxu0 0.0
    %658 = vmatprep.subr.mxu0 0.0
    %659 = vmatpush1.msra.mxu0 0.0
    %660 = vmatprep.subr.mxu0 0.0
    %661 = vmatpush1.msra.mxu0 0.0
    %662 = vmatprep.mubr.f32.mxu0 0.0
    %663 = vmatmul.mubr.f32.gmra.mrb[0].mxu0 %v176
    %v664 = vpop.f32.mrb[0].mxu0
    %v665 = vadd.f32 %v141, %v664
    %v666 = vpop.f32.mrb[0].mxu0
    %667 = vdwg.mxu0
    %668 = vmatprep.subr.mxu0 0.0
    %669 = vmatpush1.msra.mxu0 %v70
    %670 = vmatprep.subr.mxu0 0.0
    %671 = vmatpush1.msra.mxu0 %v71
    %672 = vmatprep.subr.mxu0 0.0
    %673 = vmatpush1.msra.mxu0 %v72
    %674 = vmatprep.subr.mxu0 0.0
    %675 = vmatpush1.msra.mxu0 %v73
    %676 = vmatprep.subr.mxu0 0.0
    %677 = vmatpush1.msra.mxu0 0.0
    %678 = vmatprep.subr.mxu0 0.0
    %679 = vmatpush1.msra.mxu0 0.0
    %680 = vmatprep.subr.mxu0 0.0
    %681 = vmatpush1.msra.mxu0 0.0
    %682 = vmatprep.subr.mxu0 0.0
    %683 = vmatpush1.msra.mxu0 0.0
    %684 = vmatprep.subr.mxu0 0.0
    %685 = vmatpush1.msra.mxu0 0.0
    %686 = vmatprep.subr.mxu0 0.0
    %687 = vmatpush1.msra.mxu0 0.0
    %688 = vmatprep.subr.mxu0 0.0
    %689 = vmatpush1.msra.mxu0 0.0
    %690 = vmatprep.subr.mxu0 0.0
    %691 = vmatpush1.msra.mxu0 0.0
    %692 = vmatprep.subr.mxu0 0.0
    %693 = vmatpush1.msra.mxu0 0.0
    %694 = vmatprep.subr.mxu0 0.0
    %695 = vmatpush1.msra.mxu0 0.0
    %696 = vmatprep.subr.mxu0 0.0
    %697 = vmatpush1.msra.mxu0 0.0
    %698 = vmatprep.subr.mxu0 0.0
    %699 = vmatpush1.msra.mxu0 0.0
    %700 = vmatprep.subr.mxu0 0.0
    %701 = vmatpush1.msra.mxu0 0.0
    %702 = vmatprep.subr.mxu0 0.0
    %703 = vmatpush1.msra.mxu0 0.0
    %704 = vmatprep.subr.mxu0 0.0
    %705 = vmatpush1.msra.mxu0 0.0
    %706 = vmatprep.subr.mxu0 0.0
    %707 = vmatpush1.msra.mxu0 0.0
    %708 = vmatprep.subr.mxu0 0.0
    %709 = vmatpush1.msra.mxu0 0.0
    %710 = vmatprep.subr.mxu0 0.0
    %711 = vmatpush1.msra.mxu0 0.0
    %712 = vmatprep.subr.mxu0 0.0
    %713 = vmatpush1.msra.mxu0 0.0
    %714 = vmatprep.subr.mxu0 0.0
    %715 = vmatpush1.msra.mxu0 0.0
    %716 = vmatprep.subr.mxu0 0.0
    %717 = vmatpush1.msra.mxu0 0.0
    %718 = vmatprep.subr.mxu0 0.0
    %719 = vmatpush1.msra.mxu0 0.0
    %720 = vmatprep.subr.mxu0 0.0
    %721 = vmatpush1.msra.mxu0 0.0
    %722 = vmatprep.subr.mxu0 0.0
    %723 = vmatpush1.msra.mxu0 0.0
    %724 = vmatprep.subr.mxu0 0.0
    %725 = vmatpush1.msra.mxu0 0.0
    %726 = vmatprep.subr.mxu0 0.0
    %727 = vmatpush1.msra.mxu0 0.0
    %728 = vmatprep.subr.mxu0 0.0
    %729 = vmatpush1.msra.mxu0 0.0
    %730 = vmatprep.subr.mxu0 0.0
    %731 = vmatpush1.msra.mxu0 0.0
    %732 = vmatprep.mubr.f32.mxu0 0.0
    %733 = vmatmul.mubr.f32.gmra.mrb[0].mxu0 %v176
    %v734 = vpop.f32.mrb[0].mxu0
    %v735 = vadd.f32 %v145, %v734
    %v736 = vpop.f32.mrb[0].mxu0
    %737 = vdwg.mxu0
    %738 = vmatprep.subr.mxu0 0.0
    %739 = vmatpush1.msra.mxu0 %v74
    %740 = vmatprep.subr.mxu0 0.0
    %741 = vmatpush1.msra.mxu0 %v75
    %742 = vmatprep.subr.mxu0 0.0
    %743 = vmatpush1.msra.mxu0 %v76
    %744 = vmatprep.subr.mxu0 0.0
    %745 = vmatpush1.msra.mxu0 %v77
    %746 = vmatprep.subr.mxu0 0.0
    %747 = vmatpush1.msra.mxu0 0.0
    %748 = vmatprep.subr.mxu0 0.0
    %749 = vmatpush1.msra.mxu0 0.0
    %750 = vmatprep.subr.mxu0 0.0
    %751 = vmatpush1.msra.mxu0 0.0
    %752 = vmatprep.subr.mxu0 0.0
    %753 = vmatpush1.msra.mxu0 0.0
    %754 = vmatprep.subr.mxu0 0.0
    %755 = vmatpush1.msra.mxu0 0.0
    %756 = vmatprep.subr.mxu0 0.0
    %757 = vmatpush1.msra.mxu0 0.0
    %758 = vmatprep.subr.mxu0 0.0
    %759 = vmatpush1.msra.mxu0 0.0
    %760 = vmatprep.subr.mxu0 0.0
    %761 = vmatpush1.msra.mxu0 0.0
    %762 = vmatprep.subr.mxu0 0.0
    %763 = vmatpush1.msra.mxu0 0.0
    %764 = vmatprep.subr.mxu0 0.0
    %765 = vmatpush1.msra.mxu0 0.0
    %766 = vmatprep.subr.mxu0 0.0
    %767 = vmatpush1.msra.mxu0 0.0
    %768 = vmatprep.subr.mxu0 0.0
    %769 = vmatpush1.msra.mxu0 0.0
    %770 = vmatprep.subr.mxu0 0.0
    %771 = vmatpush1.msra.mxu0 0.0
    %772 = vmatprep.subr.mxu0 0.0
    %773 = vmatpush1.msra.mxu0 0.0
    %774 = vmatprep.subr.mxu0 0.0
    %775 = vmatpush1.msra.mxu0 0.0
    %776 = vmatprep.subr.mxu0 0.0
    %777 = vmatpush1.msra.mxu0 0.0
    %778 = vmatprep.subr.mxu0 0.0
    %779 = vmatpush1.msra.mxu0 0.0
    %780 = vmatprep.subr.mxu0 0.0
    %781 = vmatpush1.msra.mxu0 0.0
    %782 = vmatprep.subr.mxu0 0.0
    %783 = vmatpush1.msra.mxu0 0.0
    %784 = vmatprep.subr.mxu0 0.0
    %785 = vmatpush1.msra.mxu0 0.0
    %786 = vmatprep.subr.mxu0 0.0
    %787 = vmatpush1.msra.mxu0 0.0
    %788 = vmatprep.subr.mxu0 0.0
    %789 = vmatpush1.msra.mxu0 0.0
    %790 = vmatprep.subr.mxu0 0.0
    %791 = vmatpush1.msra.mxu0 0.0
    %792 = vmatprep.subr.mxu0 0.0
    %793 = vmatpush1.msra.mxu0 0.0
    %794 = vmatprep.subr.mxu0 0.0
    %795 = vmatpush1.msra.mxu0 0.0
    %796 = vmatprep.subr.mxu0 0.0
    %797 = vmatpush1.msra.mxu0 0.0
    %798 = vmatprep.subr.mxu0 0.0
    %799 = vmatpush1.msra.mxu0 0.0
    %800 = vmatprep.subr.mxu0 0.0
    %801 = vmatpush1.msra.mxu0 0.0
    %802 = vmatprep.mubr.f32.mxu0 0.0
    %803 = vmatmul.mubr.f32.gmra.mrb[0].mxu0 %v176
    %v804 = vpop.f32.mrb[0].mxu0
    %v805 = vadd.f32 %v149, %v804
    %v806 = vpop.f32.mrb[0].mxu0
    %807 = vdwg.mxu0
    %808 = vmatprep.subr.mxu0 0.0
    %809 = vmatpush1.msra.mxu0 %v78
    %810 = vmatprep.subr.mxu0 0.0
    %811 = vmatpush1.msra.mxu0 %v79
    %812 = vmatprep.subr.mxu0 0.0
    %813 = vmatpush1.msra.mxu0 %v80
    %814 = vmatprep.subr.mxu0 0.0
    %815 = vmatpush1.msra.mxu0 %v81
    %816 = vmatprep.subr.mxu0 0.0
    %817 = vmatpush1.msra.mxu0 0.0
    %818 = vmatprep.subr.mxu0 0.0
    %819 = vmatpush1.msra.mxu0 0.0
    %820 = vmatprep.subr.mxu0 0.0
    %821 = vmatpush1.msra.mxu0 0.0
    %822 = vmatprep.subr.mxu0 0.0
    %823 = vmatpush1.msra.mxu0 0.0
    %824 = vmatprep.subr.mxu0 0.0
    %825 = vmatpush1.msra.mxu0 0.0
    %826 = vmatprep.subr.mxu0 0.0
    %827 = vmatpush1.msra.mxu0 0.0
    %828 = vmatprep.subr.mxu0 0.0
    %829 = vmatpush1.msra.mxu0 0.0
    %830 = vmatprep.subr.mxu0 0.0
    %831 = vmatpush1.msra.mxu0 0.0
    %832 = vmatprep.subr.mxu0 0.0
    %833 = vmatpush1.msra.mxu0 0.0
    %834 = vmatprep.subr.mxu0 0.0
    %835 = vmatpush1.msra.mxu0 0.0
    %836 = vmatprep.subr.mxu0 0.0
    %837 = vmatpush1.msra.mxu0 0.0
    %838 = vmatprep.subr.mxu0 0.0
    %839 = vmatpush1.msra.mxu0 0.0
    %840 = vmatprep.subr.mxu0 0.0
    %841 = vmatpush1.msra.mxu0 0.0
    %842 = vmatprep.subr.mxu0 0.0
    %843 = vmatpush1.msra.mxu0 0.0
    %844 = vmatprep.subr.mxu0 0.0
    %845 = vmatpush1.msra.mxu0 0.0
    %846 = vmatprep.subr.mxu0 0.0
    %847 = vmatpush1.msra.mxu0 0.0
    %848 = vmatprep.subr.mxu0 0.0
    %849 = vmatpush1.msra.mxu0 0.0
    %850 = vmatprep.subr.mxu0 0.0
    %851 = vmatpush1.msra.mxu0 0.0
    %852 = vmatprep.subr.mxu0 0.0
    %853 = vmatpush1.msra.mxu0 0.0
    %854 = vmatprep.subr.mxu0 0.0
    %855 = vmatpush1.msra.mxu0 0.0
    %856 = vmatprep.subr.mxu0 0.0
    %857 = vmatpush1.msra.mxu0 0.0
    %858 = vmatprep.subr.mxu0 0.0
    %859 = vmatpush1.msra.mxu0 0.0
    %860 = vmatprep.subr.mxu0 0.0
    %861 = vmatpush1.msra.mxu0 0.0
    %862 = vmatprep.subr.mxu0 0.0
    %863 = vmatpush1.msra.mxu0 0.0
    %864 = vmatprep.subr.mxu0 0.0
    %865 = vmatpush1.msra.mxu0 0.0
    %866 = vmatprep.subr.mxu0 0.0
    %867 = vmatpush1.msra.mxu0 0.0
    %868 = vmatprep.subr.mxu0 0.0
    %869 = vmatpush1.msra.mxu0 0.0
    %870 = vmatprep.subr.mxu0 0.0
    %871 = vmatpush1.msra.mxu0 0.0
    %872 = vmatprep.mubr.f32.mxu0 0.0
    %873 = vmatmul.mubr.f32.gmra.mrb[0].mxu0 %v176
    %v874 = vpop.f32.mrb[0].mxu0
    %v875 = vadd.f32 %v153, %v874
    %v876 = vpop.f32.mrb[0].mxu0
    %877 = vdwg.mxu0
    %878 = vmatprep.subr.mxu0 0.0
    %879 = vmatpush1.msra.mxu0 %v82
    %880 = vmatprep.subr.mxu0 0.0
    %881 = vmatpush1.msra.mxu0 %v83
    %882 = vmatprep.subr.mxu0 0.0
    %883 = vmatpush1.msra.mxu0 %v84
    %884 = vmatprep.subr.mxu0 0.0
    %885 = vmatpush1.msra.mxu0 %v85
    %886 = vmatprep.subr.mxu0 0.0
    %887 = vmatpush1.msra.mxu0 0.0
    %888 = vmatprep.subr.mxu0 0.0
    %889 = vmatpush1.msra.mxu0 0.0
    %890 = vmatprep.subr.mxu0 0.0
    %891 = vmatpush1.msra.mxu0 0.0
    %892 = vmatprep.subr.mxu0 0.0
    %893 = vmatpush1.msra.mxu0 0.0
    %894 = vmatprep.subr.mxu0 0.0
    %895 = vmatpush1.msra.mxu0 0.0
    %896 = vmatprep.subr.mxu0 0.0
    %897 = vmatpush1.msra.mxu0 0.0
    %898 = vmatprep.subr.mxu0 0.0
    %899 = vmatpush1.msra.mxu0 0.0
    %900 = vmatprep.subr.mxu0 0.0
    %901 = vmatpush1.msra.mxu0 0.0
    %902 = vmatprep.subr.mxu0 0.0
    %903 = vmatpush1.msra.mxu0 0.0
    %904 = vmatprep.subr.mxu0 0.0
    %905 = vmatpush1.msra.mxu0 0.0
    %906 = vmatprep.subr.mxu0 0.0
    %907 = vmatpush1.msra.mxu0 0.0
    %908 = vmatprep.subr.mxu0 0.0
    %909 = vmatpush1.msra.mxu0 0.0
    %910 = vmatprep.subr.mxu0 0.0
    %911 = vmatpush1.msra.mxu0 0.0
    %912 = vmatprep.subr.mxu0 0.0
    %913 = vmatpush1.msra.mxu0 0.0
    %914 = vmatprep.subr.mxu0 0.0
    %915 = vmatpush1.msra.mxu0 0.0
    %916 = vmatprep.subr.mxu0 0.0
    %917 = vmatpush1.msra.mxu0 0.0
    %918 = vmatprep.subr.mxu0 0.0
    %919 = vmatpush1.msra.mxu0 0.0
    %920 = vmatprep.subr.mxu0 0.0
    %921 = vmatpush1.msra.mxu0 0.0
    %922 = vmatprep.subr.mxu0 0.0
    %923 = vmatpush1.msra.mxu0 0.0
    %924 = vmatprep.subr.mxu0 0.0
    %925 = vmatpush1.msra.mxu0 0.0
    %926 = vmatprep.subr.mxu0 0.0
    %927 = vmatpush1.msra.mxu0 0.0
    %928 = vmatprep.subr.mxu0 0.0
    %929 = vmatpush1.msra.mxu0 0.0
    %930 = vmatprep.subr.mxu0 0.0
    %931 = vmatpush1.msra.mxu0 0.0
    %932 = vmatprep.subr.mxu0 0.0
    %933 = vmatpush1.msra.mxu0 0.0
    %934 = vmatprep.subr.mxu0 0.0
    %935 = vmatpush1.msra.mxu0 0.0
    %936 = vmatprep.subr.mxu0 0.0
    %937 = vmatpush1.msra.mxu0 0.0
    %938 = vmatprep.subr.mxu0 0.0
    %939 = vmatpush1.msra.mxu0 0.0
    %940 = vmatprep.subr.mxu0 0.0
    %941 = vmatpush1.msra.mxu0 0.0
    %942 = vmatprep.mubr.f32.mxu0 0.0
    %943 = vmatmul.mubr.f32.gmra.mrb[0].mxu0 %v176
    %v944 = vpop.f32.mrb[0].mxu0
    %v945 = vadd.f32 %v157, %v944
    %v946 = vpop.f32.mrb[0].mxu0
    %947 = vdwg.mxu0
    %948 = vmatprep.subr.mxu0 0.0
    %949 = vmatpush1.msra.mxu0 %v86
    %950 = vmatprep.subr.mxu0 0.0
    %951 = vmatpush1.msra.mxu0 %v87
    %952 = vmatprep.subr.mxu0 0.0
    %953 = vmatpush1.msra.mxu0 %v88
    %954 = vmatprep.subr.mxu0 0.0
    %955 = vmatpush1.msra.mxu0 %v89
    %956 = vmatprep.subr.mxu0 0.0
    %957 = vmatpush1.msra.mxu0 0.0
    %958 = vmatprep.subr.mxu0 0.0
    %959 = vmatpush1.msra.mxu0 0.0
    %960 = vmatprep.subr.mxu0 0.0
    %961 = vmatpush1.msra.mxu0 0.0
    %962 = vmatprep.subr.mxu0 0.0
    %963 = vmatpush1.msra.mxu0 0.0
    %964 = vmatprep.subr.mxu0 0.0
    %965 = vmatpush1.msra.mxu0 0.0
    %966 = vmatprep.subr.mxu0 0.0
    %967 = vmatpush1.msra.mxu0 0.0
    %968 = vmatprep.subr.mxu0 0.0
    %969 = vmatpush1.msra.mxu0 0.0
    %970 = vmatprep.subr.mxu0 0.0
    %971 = vmatpush1.msra.mxu0 0.0
    %972 = vmatprep.subr.mxu0 0.0
    %973 = vmatpush1.msra.mxu0 0.0
    %974 = vmatprep.subr.mxu0 0.0
    %975 = vmatpush1.msra.mxu0 0.0
    %976 = vmatprep.subr.mxu0 0.0
    %977 = vmatpush1.msra.mxu0 0.0
    %978 = vmatprep.subr.mxu0 0.0
    %979 = vmatpush1.msra.mxu0 0.0
    %980 = vmatprep.subr.mxu0 0.0
    %981 = vmatpush1.msra.mxu0 0.0
    %982 = vmatprep.subr.mxu0 0.0
    %983 = vmatpush1.msra.mxu0 0.0
    %984 = vmatprep.subr.mxu0 0.0
    %985 = vmatpush1.msra.mxu0 0.0
    %986 = vmatprep.subr.mxu0 0.0
    %987 = vmatpush1.msra.mxu0 0.0
    %988 = vmatprep.subr.mxu0 0.0
    %989 = vmatpush1.msra.mxu0 0.0
    %990 = vmatprep.subr.mxu0 0.0
    %991 = vmatpush1.msra.mxu0 0.0
    %992 = vmatprep.subr.mxu0 0.0
    %993 = vmatpush1.msra.mxu0 0.0
    %994 = vmatprep.subr.mxu0 0.0
    %995 = vmatpush1.msra.mxu0 0.0
    %996 = vmatprep.subr.mxu0 0.0
    %997 = vmatpush1.msra.mxu0 0.0
    %998 = vmatprep.subr.mxu0 0.0
    %999 = vmatpush1.msra.mxu0 0.0
    %1000 = vmatprep.subr.mxu0 0.0
    %1001 = vmatpush1.msra.mxu0 0.0
    %1002 = vmatprep.subr.mxu0 0.0
    %1003 = vmatpush1.msra.mxu0 0.0
    %1004 = vmatprep.subr.mxu0 0.0
    %1005 = vmatpush1.msra.mxu0 0.0
    %1006 = vmatprep.subr.mxu0 0.0
    %1007 = vmatpush1.msra.mxu0 0.0
    %1008 = vmatprep.subr.mxu0 0.0
    %1009 = vmatpush1.msra.mxu0 0.0
    %1010 = vmatprep.subr.mxu0 0.0
    %1011 = vmatpush1.msra.mxu0 0.0
    %1012 = vmatprep.mubr.f32.mxu0 0.0
    %1013 = vmatmul.mubr.f32.gmra.mrb[0].mxu0 %v176
    %v1014 = vpop.f32.mrb[0].mxu0
    %v1015 = vadd.f32 %v161, %v1014
    %v1016 = vpop.f32.mrb[0].mxu0
    %1017 = vdwg.mxu0
    %v1018 = vmul.f32 %v245, 0.35355338
    %v1019 = vmul.f32 %v315, 0.35355338
    %v1020 = vmul.f32 %v385, 0.35355338
    %v1021 = vmul.f32 %v455, 0.35355338
    %vm1022 = vcmask 64512
    %v1024 = vsel %vm1022, %v1018, 0
    %v1027 = vsel %vm1022, %v525, 0
    %1029 = vmatprep.subr.mxu0 0.0
    %1030 = vmatpush1.xpose.msra.mxu0 %v1027
    %1031 = vmatprep.subr.mxu0 0.0
    %1032 = vmatpush1.xpose.msra.mxu0 0.0
    %1033 = vmatprep.subr.mxu0 0.0
    %1034 = vmatpush1.xpose.msra.mxu0 0.0
    %1035 = vmatprep.subr.mxu0 0.0
    %1036 = vmatpush1.xpose.msra.mxu0 0.0
    %1037 = vmatprep.subr.mxu0 0.0
    %1038 = vmatpush1.xpose.msra.mxu0 0.0
    %1039 = vmatprep.subr.mxu0 0.0
    %1040 = vmatpush1.xpose.msra.mxu0 0.0
    %1041 = vmatprep.subr.mxu0 0.0
    %1042 = vmatpush1.xpose.msra.mxu0 0.0
    %1043 = vmatprep.subr.mxu0 0.0
    %1044 = vmatpush1.xpose.msra.mxu0 0.0
    %1045 = vmatprep.subr.mxu0 0.0
    %1046 = vmatpush1.xpose.msra.mxu0 0.0
    %1047 = vmatprep.subr.mxu0 0.0
    %1048 = vmatpush1.xpose.msra.mxu0 0.0
    %1049 = vmatprep.subr.mxu0 0.0
    %1050 = vmatpush1.xpose.msra.mxu0 0.0
    %1051 = vmatprep.subr.mxu0 0.0
    %1052 = vmatpush1.xpose.msra.mxu0 0.0
    %1053 = vmatprep.subr.mxu0 0.0
    %1054 = vmatpush1.xpose.msra.mxu0 0.0
    %1055 = vmatprep.subr.mxu0 0.0
    %1056 = vmatpush1.xpose.msra.mxu0 0.0
    %1057 = vmatprep.subr.mxu0 0.0
    %1058 = vmatpush1.xpose.msra.mxu0 0.0
    %1059 = vmatprep.subr.mxu0 0.0
    %1060 = vmatpush1.xpose.msra.mxu0 0.0
    %1061 = vmatprep.subr.mxu0 0.0
    %1062 = vmatpush1.xpose.msra.mxu0 0.0
    %1063 = vmatprep.subr.mxu0 0.0
    %1064 = vmatpush1.xpose.msra.mxu0 0.0
    %1065 = vmatprep.subr.mxu0 0.0
    %1066 = vmatpush1.xpose.msra.mxu0 0.0
    %1067 = vmatprep.subr.mxu0 0.0
    %1068 = vmatpush1.xpose.msra.mxu0 0.0
    %1069 = vmatprep.subr.mxu0 0.0
    %1070 = vmatpush1.xpose.msra.mxu0 0.0
    %1071 = vmatprep.subr.mxu0 0.0
    %1072 = vmatpush1.xpose.msra.mxu0 0.0
    %1073 = vmatprep.subr.mxu0 0.0
    %1074 = vmatpush1.xpose.msra.mxu0 0.0
    %1075 = vmatprep.subr.mxu0 0.0
    %1076 = vmatpush1.xpose.msra.mxu0 0.0
    %1077 = vmatprep.subr.mxu0 0.0
    %1078 = vmatpush1.xpose.msra.mxu0 0.0
    %1079 = vmatprep.subr.mxu0 0.0
    %1080 = vmatpush1.xpose.msra.mxu0 0.0
    %1081 = vmatprep.subr.mxu0 0.0
    %1082 = vmatpush1.xpose.msra.mxu0 0.0
    %1083 = vmatprep.subr.mxu0 0.0
    %1084 = vmatpush1.xpose.msra.mxu0 0.0
    %1085 = vmatprep.subr.mxu0 0.0
    %1086 = vmatpush1.xpose.msra.mxu0 0.0
    %1087 = vmatprep.subr.mxu0 0.0
    %1088 = vmatpush1.xpose.msra.mxu0 0.0
    %1089 = vmatprep.subr.mxu0 0.0
    %1090 = vmatpush1.xpose.msra.mxu0 0.0
    %1091 = vmatprep.subr.mxu0 0.0
    %1092 = vmatpush1.xpose.msra.mxu0 0.0
    %1093 = vmatprep.mubr.f32.mxu0 0.0
    %1094 = vmatmul.mubr.f32.gmra.mrb[0].mxu0 %v1024
    %v1095 = vpop.f32.mrb[0].mxu0
    %v1096 = vadd.f32 %v41, %v1095
    %v1097 = vpop.f32.mrb[0].mxu0
    %1098 = vdwg.mxu0
    %v1100 = vsel %vm1022, %v1019, 0
    %v1103 = vsel %vm1022, %v595, 0
    %1105 = vmatprep.subr.mxu0 0.0
    %1106 = vmatpush1.xpose.msra.mxu0 %v1103
    %1107 = vmatprep.subr.mxu0 0.0
    %1108 = vmatpush1.xpose.msra.mxu0 0.0
    %1109 = vmatprep.subr.mxu0 0.0
    %1110 = vmatpush1.xpose.msra.mxu0 0.0
    %1111 = vmatprep.subr.mxu0 0.0
    %1112 = vmatpush1.xpose.msra.mxu0 0.0
    %1113 = vmatprep.subr.mxu0 0.0
    %1114 = vmatpush1.xpose.msra.mxu0 0.0
    %1115 = vmatprep.subr.mxu0 0.0
    %1116 = vmatpush1.xpose.msra.mxu0 0.0
    %1117 = vmatprep.subr.mxu0 0.0
    %1118 = vmatpush1.xpose.msra.mxu0 0.0
    %1119 = vmatprep.subr.mxu0 0.0
    %1120 = vmatpush1.xpose.msra.mxu0 0.0
    %1121 = vmatprep.subr.mxu0 0.0
    %1122 = vmatpush1.xpose.msra.mxu0 0.0
    %1123 = vmatprep.subr.mxu0 0.0
    %1124 = vmatpush1.xpose.msra.mxu0 0.0
    %1125 = vmatprep.subr.mxu0 0.0
    %1126 = vmatpush1.xpose.msra.mxu0 0.0
    %1127 = vmatprep.subr.mxu0 0.0
    %1128 = vmatpush1.xpose.msra.mxu0 0.0
    %1129 = vmatprep.subr.mxu0 0.0
    %1130 = vmatpush1.xpose.msra.mxu0 0.0
    %1131 = vmatprep.subr.mxu0 0.0
    %1132 = vmatpush1.xpose.msra.mxu0 0.0
    %1133 = vmatprep.subr.mxu0 0.0
    %1134 = vmatpush1.xpose.msra.mxu0 0.0
    %1135 = vmatprep.subr.mxu0 0.0
    %1136 = vmatpush1.xpose.msra.mxu0 0.0
    %1137 = vmatprep.subr.mxu0 0.0
    %1138 = vmatpush1.xpose.msra.mxu0 0.0
    %1139 = vmatprep.subr.mxu0 0.0
    %1140 = vmatpush1.xpose.msra.mxu0 0.0
    %1141 = vmatprep.subr.mxu0 0.0
    %1142 = vmatpush1.xpose.msra.mxu0 0.0
    %1143 = vmatprep.subr.mxu0 0.0
    %1144 = vmatpush1.xpose.msra.mxu0 0.0
    %1145 = vmatprep.subr.mxu0 0.0
    %1146 = vmatpush1.xpose.msra.mxu0 0.0
    %1147 = vmatprep.subr.mxu0 0.0
    %1148 = vmatpush1.xpose.msra.mxu0 0.0
    %1149 = vmatprep.subr.mxu0 0.0
    %1150 = vmatpush1.xpose.msra.mxu0 0.0
    %1151 = vmatprep.subr.mxu0 0.0
    %1152 = vmatpush1.xpose.msra.mxu0 0.0
    %1153 = vmatprep.subr.mxu0 0.0
    %1154 = vmatpush1.xpose.msra.mxu0 0.0
    %1155 = vmatprep.subr.mxu0 0.0
    %1156 = vmatpush1.xpose.msra.mxu0 0.0
    %1157 = vmatprep.subr.mxu0 0.0
    %1158 = vmatpush1.xpose.msra.mxu0 0.0
    %1159 = vmatprep.subr.mxu0 0.0
    %1160 = vmatpush1.xpose.msra.mxu0 0.0
    %1161 = vmatprep.subr.mxu0 0.0
    %1162 = vmatpush1.xpose.msra.mxu0 0.0
    %1163 = vmatprep.subr.mxu0 0.0
    %1164 = vmatpush1.xpose.msra.mxu0 0.0
    %1165 = vmatprep.subr.mxu0 0.0
    %1166 = vmatpush1.xpose.msra.mxu0 0.0
    %1167 = vmatprep.subr.mxu0 0.0
    %1168 = vmatpush1.xpose.msra.mxu0 0.0
    %1169 = vmatprep.mubr.f32.mxu0 0.0
    %1170 = vmatmul.mubr.f32.gmra.mrb[0].mxu0 %v1100
    %v1171 = vpop.f32.mrb[0].mxu0
    %v1172 = vadd.f32 %v41, %v1171
    %v1173 = vpop.f32.mrb[0].mxu0
    %1174 = vdwg.mxu0
    %v1176 = vsel %vm1022, %v1020, 0
    %v1179 = vsel %vm1022, %v665, 0
    %1181 = vmatprep.subr.mxu0 0.0
    %1182 = vmatpush1.xpose.msra.mxu0 %v1179
    %1183 = vmatprep.subr.mxu0 0.0
    %1184 = vmatpush1.xpose.msra.mxu0 0.0
    %1185 = vmatprep.subr.mxu0 0.0
    %1186 = vmatpush1.xpose.msra.mxu0 0.0
    %1187 = vmatprep.subr.mxu0 0.0
    %1188 = vmatpush1.xpose.msra.mxu0 0.0
    %1189 = vmatprep.subr.mxu0 0.0
    %1190 = vmatpush1.xpose.msra.mxu0 0.0
    %1191 = vmatprep.subr.mxu0 0.0
    %1192 = vmatpush1.xpose.msra.mxu0 0.0
    %1193 = vmatprep.subr.mxu0 0.0
    %1194 = vmatpush1.xpose.msra.mxu0 0.0
    %1195 = vmatprep.subr.mxu0 0.0
    %1196 = vmatpush1.xpose.msra.mxu0 0.0
    %1197 = vmatprep.subr.mxu0 0.0
    %1198 = vmatpush1.xpose.msra.mxu0 0.0
    %1199 = vmatprep.subr.mxu0 0.0
    %1200 = vmatpush1.xpose.msra.mxu0 0.0
    %1201 = vmatprep.subr.mxu0 0.0
    %1202 = vmatpush1.xpose.msra.mxu0 0.0
    %1203 = vmatprep.subr.mxu0 0.0
    %1204 = vmatpush1.xpose.msra.mxu0 0.0
    %1205 = vmatprep.subr.mxu0 0.0
    %1206 = vmatpush1.xpose.msra.mxu0 0.0
    %1207 = vmatprep.subr.mxu0 0.0
    %1208 = vmatpush1.xpose.msra.mxu0 0.0
    %1209 = vmatprep.subr.mxu0 0.0
    %1210 = vmatpush1.xpose.msra.mxu0 0.0
    %1211 = vmatprep.subr.mxu0 0.0
    %1212 = vmatpush1.xpose.msra.mxu0 0.0
    %1213 = vmatprep.subr.mxu0 0.0
    %1214 = vmatpush1.xpose.msra.mxu0 0.0
    %1215 = vmatprep.subr.mxu0 0.0
    %1216 = vmatpush1.xpose.msra.mxu0 0.0
    %1217 = vmatprep.subr.mxu0 0.0
    %1218 = vmatpush1.xpose.msra.mxu0 0.0
    %1219 = vmatprep.subr.mxu0 0.0
    %1220 = vmatpush1.xpose.msra.mxu0 0.0
    %1221 = vmatprep.subr.mxu0 0.0
    %1222 = vmatpush1.xpose.msra.mxu0 0.0
    %1223 = vmatprep.subr.mxu0 0.0
    %1224 = vmatpush1.xpose.msra.mxu0 0.0
    %1225 = vmatprep.subr.mxu0 0.0
    %1226 = vmatpush1.xpose.msra.mxu0 0.0
    %1227 = vmatprep.subr.mxu0 0.0
    %1228 = vmatpush1.xpose.msra.mxu0 0.0
    %1229 = vmatprep.subr.mxu0 0.0
    %1230 = vmatpush1.xpose.msra.mxu0 0.0
    %1231 = vmatprep.subr.mxu0 0.0
    %1232 = vmatpush1.xpose.msra.mxu0 0.0
    %1233 = vmatprep.subr.mxu0 0.0
    %1234 = vmatpush1.xpose.msra.mxu0 0.0
    %1235 = vmatprep.subr.mxu0 0.0
    %1236 = vmatpush1.xpose.msra.mxu0 0.0
    %1237 = vmatprep.subr.mxu0 0.0
    %1238 = vmatpush1.xpose.msra.mxu0 0.0
    %1239 = vmatprep.subr.mxu0 0.0
    %1240 = vmatpush1.xpose.msra.mxu0 0.0
    %1241 = vmatprep.subr.mxu0 0.0
    %1242 = vmatpush1.xpose.msra.mxu0 0.0
    %1243 = vmatprep.subr.mxu0 0.0
    %1244 = vmatpush1.xpose.msra.mxu0 0.0
    %1245 = vmatprep.mubr.f32.mxu0 0.0
    %1246 = vmatmul.mubr.f32.gmra.mrb[0].mxu0 %v1176
    %v1247 = vpop.f32.mrb[0].mxu0
    %v1248 = vadd.f32 %v41, %v1247
    %v1249 = vpop.f32.mrb[0].mxu0
    %1250 = vdwg.mxu0
    %v1252 = vsel %vm1022, %v1021, 0
    %v1255 = vsel %vm1022, %v735, 0
    %1257 = vmatprep.subr.mxu0 0.0
    %1258 = vmatpush1.xpose.msra.mxu0 %v1255
    %1259 = vmatprep.subr.mxu0 0.0
    %1260 = vmatpush1.xpose.msra.mxu0 0.0
    %1261 = vmatprep.subr.mxu0 0.0
    %1262 = vmatpush1.xpose.msra.mxu0 0.0
    %1263 = vmatprep.subr.mxu0 0.0
    %1264 = vmatpush1.xpose.msra.mxu0 0.0
    %1265 = vmatprep.subr.mxu0 0.0
    %1266 = vmatpush1.xpose.msra.mxu0 0.0
    %1267 = vmatprep.subr.mxu0 0.0
    %1268 = vmatpush1.xpose.msra.mxu0 0.0
    %1269 = vmatprep.subr.mxu0 0.0
    %1270 = vmatpush1.xpose.msra.mxu0 0.0
    %1271 = vmatprep.subr.mxu0 0.0
    %1272 = vmatpush1.xpose.msra.mxu0 0.0
    %1273 = vmatprep.subr.mxu0 0.0
    %1274 = vmatpush1.xpose.msra.mxu0 0.0
    %1275 = vmatprep.subr.mxu0 0.0
    %1276 = vmatpush1.xpose.msra.mxu0 0.0
    %1277 = vmatprep.subr.mxu0 0.0
    %1278 = vmatpush1.xpose.msra.mxu0 0.0
    %1279 = vmatprep.subr.mxu0 0.0
    %1280 = vmatpush1.xpose.msra.mxu0 0.0
    %1281 = vmatprep.subr.mxu0 0.0
    %1282 = vmatpush1.xpose.msra.mxu0 0.0
    %1283 = vmatprep.subr.mxu0 0.0
    %1284 = vmatpush1.xpose.msra.mxu0 0.0
    %1285 = vmatprep.subr.mxu0 0.0
    %1286 = vmatpush1.xpose.msra.mxu0 0.0
    %1287 = vmatprep.subr.mxu0 0.0
    %1288 = vmatpush1.xpose.msra.mxu0 0.0
    %1289 = vmatprep.subr.mxu0 0.0
    %1290 = vmatpush1.xpose.msra.mxu0 0.0
    %1291 = vmatprep.subr.mxu0 0.0
    %1292 = vmatpush1.xpose.msra.mxu0 0.0
    %1293 = vmatprep.subr.mxu0 0.0
    %1294 = vmatpush1.xpose.msra.mxu0 0.0
    %1295 = vmatprep.subr.mxu0 0.0
    %1296 = vmatpush1.xpose.msra.mxu0 0.0
    %1297 = vmatprep.subr.mxu0 0.0
    %1298 = vmatpush1.xpose.msra.mxu0 0.0
    %1299 = vmatprep.subr.mxu0 0.0
    %1300 = vmatpush1.xpose.msra.mxu0 0.0
    %1301 = vmatprep.subr.mxu0 0.0
    %1302 = vmatpush1.xpose.msra.mxu0 0.0
    %1303 = vmatprep.subr.mxu0 0.0
    %1304 = vmatpush1.xpose.msra.mxu0 0.0
    %1305 = vmatprep.subr.mxu0 0.0
    %1306 = vmatpush1.xpose.msra.mxu0 0.0
    %1307 = vmatprep.subr.mxu0 0.0
    %1308 = vmatpush1.xpose.msra.mxu0 0.0
    %1309 = vmatprep.subr.mxu0 0.0
    %1310 = vmatpush1.xpose.msra.mxu0 0.0
    %1311 = vmatprep.subr.mxu0 0.0
    %1312 = vmatpush1.xpose.msra.mxu0 0.0
    %1313 = vmatprep.subr.mxu0 0.0
    %1314 = vmatpush1.xpose.msra.mxu0 0.0
    %1315 = vmatprep.subr.mxu0 0.0
    %1316 = vmatpush1.xpose.msra.mxu0 0.0
    %1317 = vmatprep.subr.mxu0 0.0
    %1318 = vmatpush1.xpose.msra.mxu0 0.0
    %1319 = vmatprep.subr.mxu0 0.0
    %1320 = vmatpush1.xpose.msra.mxu0 0.0
    %1321 = vmatprep.mubr.f32.mxu0 0.0
    %1322 = vmatmul.mubr.f32.gmra.mrb[0].mxu0 %v1252
    %v1323 = vpop.f32.mrb[0].mxu0
    %v1324 = vadd.f32 %v41, %v1323
    %v1325 = vpop.f32.mrb[0].mxu0
    %1326 = vdwg.mxu0
    %v1327 = vsel %vm1022, %v1096, -inf
    %1328 = vmax.xlane.f32.xlu0 %v1327
    %v1329 = vpop.xlane.xlu0 %1328
    %v1330 = vsel %vm1022, %v1172, -inf
    %1331 = vmax.xlane.f32.xlu0 %v1330
    %v1332 = vpop.xlane.xlu0 %1331
    %v1333 = vsel %vm1022, %v1248, -inf
    %1334 = vmax.xlane.f32.xlu0 %v1333
    %v1335 = vpop.xlane.xlu0 %1334
    %v1336 = vsel %vm1022, %v1324, -inf
    %1337 = vmax.xlane.f32.xlu0 %v1336
    %v1338 = vpop.xlane.xlu0 %1337
    %v1339 = vsub.f32 %v1096, %v1329
    %v1340 = vsub.f32 %v1172, %v1332
    %v1341 = vsub.f32 %v1248, %v1335
    %v1342 = vsub.f32 %v1324, %v1338
    %v1343 = vmul.f32 %v1339, 1.442695
    %v1344 = vpow.pop %v1343
    %v1345 = vmul.f32 %v1340, 1.442695
    %v1346 = vpow.pop %v1345
    %v1347 = vmul.f32 %v1341, 1.442695
    %v1348 = vpow.pop %v1347
    %v1349 = vmul.f32 %v1342, 1.442695
    %v1350 = vpow.pop %v1349
    %v1351 = vsel %vm1022, %v1344, 0.0
    %1352 = vadd.xlane.f32.xlu0 %v1351
    %v1353 = vpop.xlane.xlu0 %1352
    %v1354 = vsel %vm1022, %v1346, 0.0
    %1355 = vadd.xlane.f32.xlu0 %v1354
    %v1356 = vpop.xlane.xlu0 %1355
    %v1357 = vsel %vm1022, %v1348, 0.0
    %1358 = vadd.xlane.f32.xlu0 %v1357
    %v1359 = vpop.xlane.xlu0 %1358
    %v1360 = vsel %vm1022, %v1350, 0.0
    %1361 = vadd.xlane.f32.xlu0 %v1360
    %v1362 = vpop.xlane.xlu0 %1361
    %v1363 = vrcp.pop %v1353
    %v1364 = vrcp.pop %v1356
    %v1365 = vrcp.pop %v1359
    %v1366 = vrcp.pop %v1362
    %v1367 = vmul.f32 %v1344, %v1363
    %v1368 = vmul.f32 %v1346, %v1364
    %v1369 = vmul.f32 %v1348, %v1365
    %v1370 = vmul.f32 %v1350, %v1366
    %v1372 = vsel %vm1022, %v1367, 0
    %1374 = vmatprep.subr.mxu0 0.0
    %1375 = vmatpush1.msra.mxu0 %v805
    %1376 = vmatprep.subr.mxu0 0.0
    %1377 = vmatpush1.msra.mxu0 0.0
    %1378 = vmatprep.subr.mxu0 0.0
    %1379 = vmatpush1.msra.mxu0 0.0
    %1380 = vmatprep.subr.mxu0 0.0
    %1381 = vmatpush1.msra.mxu0 0.0
    %1382 = vmatprep.subr.mxu0 0.0
    %1383 = vmatpush1.msra.mxu0 0.0
    %1384 = vmatprep.subr.mxu0 0.0
    %1385 = vmatpush1.msra.mxu0 0.0
    %1386 = vmatprep.subr.mxu0 0.0
    %1387 = vmatpush1.msra.mxu0 0.0
    %1388 = vmatprep.subr.mxu0 0.0
    %1389 = vmatpush1.msra.mxu0 0.0
    %1390 = vmatprep.subr.mxu0 0.0
    %1391 = vmatpush1.msra.mxu0 0.0
    %1392 = vmatprep.subr.mxu0 0.0
    %1393 = vmatpush1.msra.mxu0 0.0
    %1394 = vmatprep.subr.mxu0 0.0
    %1395 = vmatpush1.msra.mxu0 0.0
    %1396 = vmatprep.subr.mxu0 0.0
    %1397 = vmatpush1.msra.mxu0 0.0
    %1398 = vmatprep.subr.mxu0 0.0
    %1399 = vmatpush1.msra.mxu0 0.0
    %1400 = vmatprep.subr.mxu0 0.0
    %1401 = vmatpush1.msra.mxu0 0.0
    %1402 = vmatprep.subr.mxu0 0.0
    %1403 = vmatpush1.msra.mxu0 0.0
    %1404 = vmatprep.subr.mxu0 0.0
    %1405 = vmatpush1.msra.mxu0 0.0
    %1406 = vmatprep.subr.mxu0 0.0
    %1407 = vmatpush1.msra.mxu0 0.0
    %1408 = vmatprep.subr.mxu0 0.0
    %1409 = vmatpush1.msra.mxu0 0.0
    %1410 = vmatprep.subr.mxu0 0.0
    %1411 = vmatpush1.msra.mxu0 0.0
    %1412 = vmatprep.subr.mxu0 0.0
    %1413 = vmatpush1.msra.mxu0 0.0
    %1414 = vmatprep.subr.mxu0 0.0
    %1415 = vmatpush1.msra.mxu0 0.0
    %1416 = vmatprep.subr.mxu0 0.0
    %1417 = vmatpush1.msra.mxu0 0.0
    %1418 = vmatprep.subr.mxu0 0.0
    %1419 = vmatpush1.msra.mxu0 0.0
    %1420 = vmatprep.subr.mxu0 0.0
    %1421 = vmatpush1.msra.mxu0 0.0
    %1422 = vmatprep.subr.mxu0 0.0
    %1423 = vmatpush1.msra.mxu0 0.0
    %1424 = vmatprep.subr.mxu0 0.0
    %1425 = vmatpush1.msra.mxu0 0.0
    %1426 = vmatprep.subr.mxu0 0.0
    %1427 = vmatpush1.msra.mxu0 0.0
    %1428 = vmatprep.subr.mxu0 0.0
    %1429 = vmatpush1.msra.mxu0 0.0
    %1430 = vmatprep.subr.mxu0 0.0
    %1431 = vmatpush1.msra.mxu0 0.0
    %1432 = vmatprep.subr.mxu0 0.0
    %1433 = vmatpush1.msra.mxu0 0.0
    %1434 = vmatprep.subr.mxu0 0.0
    %1435 = vmatpush1.msra.mxu0 0.0
    %1436 = vmatprep.subr.mxu0 0.0
    %1437 = vmatpush1.msra.mxu0 0.0
    %1438 = vmatprep.mubr.f32.mxu0 0.0
    %1439 = vmatmul.mubr.f32.gmra.mrb[0].mxu0 %v1372
    %v1440 = vpop.f32.mrb[0].mxu0
    %v1441 = vadd.f32 0.0, %v1440
    %v1442 = vpop.f32.mrb[0].mxu0
    %1443 = vdwg.mxu0
    %v1445 = vsel %vm1022, %v1368, 0
    %1447 = vmatprep.subr.mxu0 0.0
    %1448 = vmatpush1.msra.mxu0 %v875
    %1449 = vmatprep.subr.mxu0 0.0
    %1450 = vmatpush1.msra.mxu0 0.0
    %1451 = vmatprep.subr.mxu0 0.0
    %1452 = vmatpush1.msra.mxu0 0.0
    %1453 = vmatprep.subr.mxu0 0.0
    %1454 = vmatpush1.msra.mxu0 0.0
    %1455 = vmatprep.subr.mxu0 0.0
    %1456 = vmatpush1.msra.mxu0 0.0
    %1457 = vmatprep.subr.mxu0 0.0
    %1458 = vmatpush1.msra.mxu0 0.0
    %1459 = vmatprep.subr.mxu0 0.0
    %1460 = vmatpush1.msra.mxu0 0.0
    %1461 = vmatprep.subr.mxu0 0.0
    %1462 = vmatpush1.msra.mxu0 0.0
    %1463 = vmatprep.subr.mxu0 0.0
    %1464 = vmatpush1.msra.mxu0 0.0
    %1465 = vmatprep.subr.mxu0 0.0
    %1466 = vmatpush1.msra.mxu0 0.0
    %1467 = vmatprep.subr.mxu0 0.0
    %1468 = vmatpush1.msra.mxu0 0.0
    %1469 = vmatprep.subr.mxu0 0.0
    %1470 = vmatpush1.msra.mxu0 0.0
    %1471 = vmatprep.subr.mxu0 0.0
    %1472 = vmatpush1.msra.mxu0 0.0
    %1473 = vmatprep.subr.mxu0 0.0
    %1474 = vmatpush1.msra.mxu0 0.0
    %1475 = vmatprep.subr.mxu0 0.0
    %1476 = vmatpush1.msra.mxu0 0.0
    %1477 = vmatprep.subr.mxu0 0.0
    %1478 = vmatpush1.msra.mxu0 0.0
    %1479 = vmatprep.subr.mxu0 0.0
    %1480 = vmatpush1.msra.mxu0 0.0
    %1481 = vmatprep.subr.mxu0 0.0
    %1482 = vmatpush1.msra.mxu0 0.0
    %1483 = vmatprep.subr.mxu0 0.0
    %1484 = vmatpush1.msra.mxu0 0.0
    %1485 = vmatprep.subr.mxu0 0.0
    %1486 = vmatpush1.msra.mxu0 0.0
    %1487 = vmatprep.subr.mxu0 0.0
    %1488 = vmatpush1.msra.mxu0 0.0
    %1489 = vmatprep.subr.mxu0 0.0
    %1490 = vmatpush1.msra.mxu0 0.0
    %1491 = vmatprep.subr.mxu0 0.0
    %1492 = vmatpush1.msra.mxu0 0.0
    %1493 = vmatprep.subr.mxu0 0.0
    %1494 = vmatpush1.msra.mxu0 0.0
    %1495 = vmatprep.subr.mxu0 0.0
    %1496 = vmatpush1.msra.mxu0 0.0
    %1497 = vmatprep.subr.mxu0 0.0
    %1498 = vmatpush1.msra.mxu0 0.0
    %1499 = vmatprep.subr.mxu0 0.0
    %1500 = vmatpush1.msra.mxu0 0.0
    %1501 = vmatprep.subr.mxu0 0.0
    %1502 = vmatpush1.msra.mxu0 0.0
    %1503 = vmatprep.subr.mxu0 0.0
    %1504 = vmatpush1.msra.mxu0 0.0
    %1505 = vmatprep.subr.mxu0 0.0
    %1506 = vmatpush1.msra.mxu0 0.0
    %1507 = vmatprep.subr.mxu0 0.0
    %1508 = vmatpush1.msra.mxu0 0.0
    %1509 = vmatprep.subr.mxu0 0.0
    %1510 = vmatpush1.msra.mxu0 0.0
    %1511 = vmatprep.mubr.f32.mxu0 0.0
    %1512 = vmatmul.mubr.f32.gmra.mrb[0].mxu0 %v1445
    %v1513 = vpop.f32.mrb[0].mxu0
    %v1514 = vadd.f32 0.0, %v1513
    %v1515 = vpop.f32.mrb[0].mxu0
    %1516 = vdwg.mxu0
    %v1518 = vsel %vm1022, %v1369, 0
    %1520 = vmatprep.subr.mxu0 0.0
    %1521 = vmatpush1.msra.mxu0 %v945
    %1522 = vmatprep.subr.mxu0 0.0
    %1523 = vmatpush1.msra.mxu0 0.0
    %1524 = vmatprep.subr.mxu0 0.0
    %1525 = vmatpush1.msra.mxu0 0.0
    %1526 = vmatprep.subr.mxu0 0.0
    %1527 = vmatpush1.msra.mxu0 0.0
    %1528 = vmatprep.subr.mxu0 0.0
    %1529 = vmatpush1.msra.mxu0 0.0
    %1530 = vmatprep.subr.mxu0 0.0
    %1531 = vmatpush1.msra.mxu0 0.0
    %1532 = vmatprep.subr.mxu0 0.0
    %1533 = vmatpush1.msra.mxu0 0.0
    %1534 = vmatprep.subr.mxu0 0.0
    %1535 = vmatpush1.msra.mxu0 0.0
    %1536 = vmatprep.subr.mxu0 0.0
    %1537 = vmatpush1.msra.mxu0 0.0
    %1538 = vmatprep.subr.mxu0 0.0
    %1539 = vmatpush1.msra.mxu0 0.0
    %1540 = vmatprep.subr.mxu0 0.0
    %1541 = vmatpush1.msra.mxu0 0.0
    %1542 = vmatprep.subr.mxu0 0.0
    %1543 = vmatpush1.msra.mxu0 0.0
    %1544 = vmatprep.subr.mxu0 0.0
    %1545 = vmatpush1.msra.mxu0 0.0
    %1546 = vmatprep.subr.mxu0 0.0
    %1547 = vmatpush1.msra.mxu0 0.0
    %1548 = vmatprep.subr.mxu0 0.0
    %1549 = vmatpush1.msra.mxu0 0.0
    %1550 = vmatprep.subr.mxu0 0.0
    %1551 = vmatpush1.msra.mxu0 0.0
    %1552 = vmatprep.subr.mxu0 0.0
    %1553 = vmatpush1.msra.mxu0 0.0
    %1554 = vmatprep.subr.mxu0 0.0
    %1555 = vmatpush1.msra.mxu0 0.0
    %1556 = vmatprep.subr.mxu0 0.0
    %1557 = vmatpush1.msra.mxu0 0.0
    %1558 = vmatprep.subr.mxu0 0.0
    %1559 = vmatpush1.msra.mxu0 0.0
    %1560 = vmatprep.subr.mxu0 0.0
    %1561 = vmatpush1.msra.mxu0 0.0
    %1562 = vmatprep.subr.mxu0 0.0
    %1563 = vmatpush1.msra.mxu0 0.0
    %1564 = vmatprep.subr.mxu0 0.0
    %1565 = vmatpush1.msra.mxu0 0.0
    %1566 = vmatprep.subr.mxu0 0.0
    %1567 = vmatpush1.msra.mxu0 0.0
    %1568 = vmatprep.subr.mxu0 0.0
    %1569 = vmatpush1.msra.mxu0 0.0
    %1570 = vmatprep.subr.mxu0 0.0
    %1571 = vmatpush1.msra.mxu0 0.0
    %1572 = vmatprep.subr.mxu0 0.0
    %1573 = vmatpush1.msra.mxu0 0.0
    %1574 = vmatprep.subr.mxu0 0.0
    %1575 = vmatpush1.msra.mxu0 0.0
    %1576 = vmatprep.subr.mxu0 0.0
    %1577 = vmatpush1.msra.mxu0 0.0
    %1578 = vmatprep.subr.mxu0 0.0
    %1579 = vmatpush1.msra.mxu0 0.0
    %1580 = vmatprep.subr.mxu0 0.0
    %1581 = vmatpush1.msra.mxu0 0.0
    %1582 = vmatprep.subr.mxu0 0.0
    %1583 = vmatpush1.msra.mxu0 0.0
    %1584 = vmatprep.mubr.f32.mxu0 0.0
    %1585 = vmatmul.mubr.f32.gmra.mrb[0].mxu0 %v1518
    %v1586 = vpop.f32.mrb[0].mxu0
    %v1587 = vadd.f32 0.0, %v1586
    %v1588 = vpop.f32.mrb[0].mxu0
    %1589 = vdwg.mxu0
    %v1591 = vsel %vm1022, %v1370, 0
    %1593 = vmatprep.subr.mxu0 0.0
    %1594 = vmatpush1.msra.mxu0 %v1015
    %1595 = vmatprep.subr.mxu0 0.0
    %1596 = vmatpush1.msra.mxu0 0.0
    %1597 = vmatprep.subr.mxu0 0.0
    %1598 = vmatpush1.msra.mxu0 0.0
    %1599 = vmatprep.subr.mxu0 0.0
    %1600 = vmatpush1.msra.mxu0 0.0
    %1601 = vmatprep.subr.mxu0 0.0
    %1602 = vmatpush1.msra.mxu0 0.0
    %1603 = vmatprep.subr.mxu0 0.0
    %1604 = vmatpush1.msra.mxu0 0.0
    %1605 = vmatprep.subr.mxu0 0.0
    %1606 = vmatpush1.msra.mxu0 0.0
    %1607 = vmatprep.subr.mxu0 0.0
    %1608 = vmatpush1.msra.mxu0 0.0
    %1609 = vmatprep.subr.mxu0 0.0
    %1610 = vmatpush1.msra.mxu0 0.0
    %1611 = vmatprep.subr.mxu0 0.0
    %1612 = vmatpush1.msra.mxu0 0.0
    %1613 = vmatprep.subr.mxu0 0.0
    %1614 = vmatpush1.msra.mxu0 0.0
    %1615 = vmatprep.subr.mxu0 0.0
    %1616 = vmatpush1.msra.mxu0 0.0
    %1617 = vmatprep.subr.mxu0 0.0
    %1618 = vmatpush1.msra.mxu0 0.0
    %1619 = vmatprep.subr.mxu0 0.0
    %1620 = vmatpush1.msra.mxu0 0.0
    %1621 = vmatprep.subr.mxu0 0.0
    %1622 = vmatpush1.msra.mxu0 0.0
    %1623 = vmatprep.subr.mxu0 0.0
    %1624 = vmatpush1.msra.mxu0 0.0
    %1625 = vmatprep.subr.mxu0 0.0
    %1626 = vmatpush1.msra.mxu0 0.0
    %1627 = vmatprep.subr.mxu0 0.0
    %1628 = vmatpush1.msra.mxu0 0.0
    %1629 = vmatprep.subr.mxu0 0.0
    %1630 = vmatpush1.msra.mxu0 0.0
    %1631 = vmatprep.subr.mxu0 0.0
    %1632 = vmatpush1.msra.mxu0 0.0
    %1633 = vmatprep.subr.mxu0 0.0
    %1634 = vmatpush1.msra.mxu0 0.0
    %1635 = vmatprep.subr.mxu0 0.0
    %1636 = vmatpush1.msra.mxu0 0.0
    %1637 = vmatprep.subr.mxu0 0.0
    %1638 = vmatpush1.msra.mxu0 0.0
    %1639 = vmatprep.subr.mxu0 0.0
    %1640 = vmatpush1.msra.mxu0 0.0
    %1641 = vmatprep.subr.mxu0 0.0
    %1642 = vmatpush1.msra.mxu0 0.0
    %1643 = vmatprep.subr.mxu0 0.0
    %1644 = vmatpush1.msra.mxu0 0.0
    %1645 = vmatprep.subr.mxu0 0.0
    %1646 = vmatpush1.msra.mxu0 0.0
    %1647 = vmatprep.subr.mxu0 0.0
    %1648 = vmatpush1.msra.mxu0 0.0
    %1649 = vmatprep.subr.mxu0 0.0
    %1650 = vmatpush1.msra.mxu0 0.0
    %1651 = vmatprep.subr.mxu0 0.0
    %1652 = vmatpush1.msra.mxu0 0.0
    %1653 = vmatprep.subr.mxu0 0.0
    %1654 = vmatpush1.msra.mxu0 0.0
    %1655 = vmatprep.subr.mxu0 0.0
    %1656 = vmatpush1.msra.mxu0 0.0
    %1657 = vmatprep.mubr.f32.mxu0 0.0
    %1658 = vmatmul.mubr.f32.gmra.mrb[0].mxu0 %v1591
    %v1659 = vpop.f32.mrb[0].mxu0
    %v1660 = vadd.f32 0.0, %v1659
    %v1661 = vpop.f32.mrb[0].mxu0
    %1662 = vdwg.mxu0
    %v1663 = vld [vmem:[%s5] sm:$0xff]
    %v1664 = vld [vmem:[%s5 + $0x8] sm:$0xff]
    %v1665 = vld [vmem:[%s5 + $0x10] sm:$0xff]
    %v1666 = vld [vmem:[%s5 + $0x18] sm:$0xff]
    %v1668 = vsel %vm1022, %v1441, 0
    %1670 = vmatprep.subr.mxu0 0.0
    %1671 = vmatpush1.msra.mxu0 %v1663
    %1672 = vmatprep.subr.mxu0 0.0
    %1673 = vmatpush1.msra.mxu0 0.0
    %1674 = vmatprep.subr.mxu0 0.0
    %1675 = vmatpush1.msra.mxu0 0.0
    %1676 = vmatprep.subr.mxu0 0.0
    %1677 = vmatpush1.msra.mxu0 0.0
    %1678 = vmatprep.subr.mxu0 0.0
    %1679 = vmatpush1.msra.mxu0 0.0
    %1680 = vmatprep.subr.mxu0 0.0
    %1681 = vmatpush1.msra.mxu0 0.0
    %1682 = vmatprep.subr.mxu0 0.0
    %1683 = vmatpush1.msra.mxu0 0.0
    %1684 = vmatprep.subr.mxu0 0.0
    %1685 = vmatpush1.msra.mxu0 0.0
    %1686 = vmatprep.subr.mxu0 0.0
    %1687 = vmatpush1.msra.mxu0 0.0
    %1688 = vmatprep.subr.mxu0 0.0
    %1689 = vmatpush1.msra.mxu0 0.0
    %1690 = vmatprep.subr.mxu0 0.0
    %1691 = vmatpush1.msra.mxu0 0.0
    %1692 = vmatprep.subr.mxu0 0.0
    %1693 = vmatpush1.msra.mxu0 0.0
    %1694 = vmatprep.subr.mxu0 0.0
    %1695 = vmatpush1.msra.mxu0 0.0
    %1696 = vmatprep.subr.mxu0 0.0
    %1697 = vmatpush1.msra.mxu0 0.0
    %1698 = vmatprep.subr.mxu0 0.0
    %1699 = vmatpush1.msra.mxu0 0.0
    %1700 = vmatprep.subr.mxu0 0.0
    %1701 = vmatpush1.msra.mxu0 0.0
    %1702 = vmatprep.subr.mxu0 0.0
    %1703 = vmatpush1.msra.mxu0 0.0
    %1704 = vmatprep.subr.mxu0 0.0
    %1705 = vmatpush1.msra.mxu0 0.0
    %1706 = vmatprep.subr.mxu0 0.0
    %1707 = vmatpush1.msra.mxu0 0.0
    %1708 = vmatprep.subr.mxu0 0.0
    %1709 = vmatpush1.msra.mxu0 0.0
    %1710 = vmatprep.subr.mxu0 0.0
    %1711 = vmatpush1.msra.mxu0 0.0
    %1712 = vmatprep.subr.mxu0 0.0
    %1713 = vmatpush1.msra.mxu0 0.0
    %1714 = vmatprep.subr.mxu0 0.0
    %1715 = vmatpush1.msra.mxu0 0.0
    %1716 = vmatprep.subr.mxu0 0.0
    %1717 = vmatpush1.msra.mxu0 0.0
    %1718 = vmatprep.subr.mxu0 0.0
    %1719 = vmatpush1.msra.mxu0 0.0
    %1720 = vmatprep.subr.mxu0 0.0
    %1721 = vmatpush1.msra.mxu0 0.0
    %1722 = vmatprep.subr.mxu0 0.0
    %1723 = vmatpush1.msra.mxu0 0.0
    %1724 = vmatprep.subr.mxu0 0.0
    %1725 = vmatpush1.msra.mxu0 0.0
    %1726 = vmatprep.subr.mxu0 0.0
    %1727 = vmatpush1.msra.mxu0 0.0
    %1728 = vmatprep.subr.mxu0 0.0
    %1729 = vmatpush1.msra.mxu0 0.0
    %1730 = vmatprep.subr.mxu0 0.0
    %1731 = vmatpush1.msra.mxu0 0.0
    %1732 = vmatprep.subr.mxu0 0.0
    %1733 = vmatpush1.msra.mxu0 0.0
    %1734 = vmatprep.mubr.f32.mxu0 0.0
    %1735 = vmatmul.mubr.f32.gmra.mrb[0].mxu0 %v1668
    %v1736 = vpop.f32.mrb[0].mxu0
    %v1737 = vadd.f32 0.0, %v1736
    %v1738 = vpop.f32.mrb[0].mxu0
    %1739 = vdwg.mxu0
    %v1741 = vsel %vm1022, %v1514, 0
    %1743 = vmatprep.subr.mxu0 0.0
    %1744 = vmatpush1.msra.mxu0 %v1664
    %1745 = vmatprep.subr.mxu0 0.0
    %1746 = vmatpush1.msra.mxu0 0.0
    %1747 = vmatprep.subr.mxu0 0.0
    %1748 = vmatpush1.msra.mxu0 0.0
    %1749 = vmatprep.subr.mxu0 0.0
    %1750 = vmatpush1.msra.mxu0 0.0
    %1751 = vmatprep.subr.mxu0 0.0
    %1752 = vmatpush1.msra.mxu0 0.0
    %1753 = vmatprep.subr.mxu0 0.0
    %1754 = vmatpush1.msra.mxu0 0.0
    %1755 = vmatprep.subr.mxu0 0.0
    %1756 = vmatpush1.msra.mxu0 0.0
    %1757 = vmatprep.subr.mxu0 0.0
    %1758 = vmatpush1.msra.mxu0 0.0
    %1759 = vmatprep.subr.mxu0 0.0
    %1760 = vmatpush1.msra.mxu0 0.0
    %1761 = vmatprep.subr.mxu0 0.0
    %1762 = vmatpush1.msra.mxu0 0.0
    %1763 = vmatprep.subr.mxu0 0.0
    %1764 = vmatpush1.msra.mxu0 0.0
    %1765 = vmatprep.subr.mxu0 0.0
    %1766 = vmatpush1.msra.mxu0 0.0
    %1767 = vmatprep.subr.mxu0 0.0
    %1768 = vmatpush1.msra.mxu0 0.0
    %1769 = vmatprep.subr.mxu0 0.0
    %1770 = vmatpush1.msra.mxu0 0.0
    %1771 = vmatprep.subr.mxu0 0.0
    %1772 = vmatpush1.msra.mxu0 0.0
    %1773 = vmatprep.subr.mxu0 0.0
    %1774 = vmatpush1.msra.mxu0 0.0
    %1775 = vmatprep.subr.mxu0 0.0
    %1776 = vmatpush1.msra.mxu0 0.0
    %1777 = vmatprep.subr.mxu0 0.0
    %1778 = vmatpush1.msra.mxu0 0.0
    %1779 = vmatprep.subr.mxu0 0.0
    %1780 = vmatpush1.msra.mxu0 0.0
    %1781 = vmatprep.subr.mxu0 0.0
    %1782 = vmatpush1.msra.mxu0 0.0
    %1783 = vmatprep.subr.mxu0 0.0
    %1784 = vmatpush1.msra.mxu0 0.0
    %1785 = vmatprep.subr.mxu0 0.0
    %1786 = vmatpush1.msra.mxu0 0.0
    %1787 = vmatprep.subr.mxu0 0.0
    %1788 = vmatpush1.msra.mxu0 0.0
    %1789 = vmatprep.subr.mxu0 0.0
    %1790 = vmatpush1.msra.mxu0 0.0
    %1791 = vmatprep.subr.mxu0 0.0
    %1792 = vmatpush1.msra.mxu0 0.0
    %1793 = vmatprep.subr.mxu0 0.0
    %1794 = vmatpush1.msra.mxu0 0.0
    %1795 = vmatprep.subr.mxu0 0.0
    %1796 = vmatpush1.msra.mxu0 0.0
    %1797 = vmatprep.subr.mxu0 0.0
    %1798 = vmatpush1.msra.mxu0 0.0
    %1799 = vmatprep.subr.mxu0 0.0
    %1800 = vmatpush1.msra.mxu0 0.0
    %1801 = vmatprep.subr.mxu0 0.0
    %1802 = vmatpush1.msra.mxu0 0.0
    %1803 = vmatprep.subr.mxu0 0.0
    %1804 = vmatpush1.msra.mxu0 0.0
    %1805 = vmatprep.subr.mxu0 0.0
    %1806 = vmatpush1.msra.mxu0 0.0
    %1807 = vmatprep.mubr.f32.mxu0 0.0
    %1808 = vmatmul.mubr.f32.gmra.mrb[0].mxu0 %v1741
    %v1809 = vpop.f32.mrb[0].mxu0
    %v1810 = vadd.f32 0.0, %v1809
    %v1811 = vpop.f32.mrb[0].mxu0
    %1812 = vdwg.mxu0
    %v1814 = vsel %vm1022, %v1587, 0
    %1816 = vmatprep.subr.mxu0 0.0
    %1817 = vmatpush1.msra.mxu0 %v1665
    %1818 = vmatprep.subr.mxu0 0.0
    %1819 = vmatpush1.msra.mxu0 0.0
    %1820 = vmatprep.subr.mxu0 0.0
    %1821 = vmatpush1.msra.mxu0 0.0
    %1822 = vmatprep.subr.mxu0 0.0
    %1823 = vmatpush1.msra.mxu0 0.0
    %1824 = vmatprep.subr.mxu0 0.0
    %1825 = vmatpush1.msra.mxu0 0.0
    %1826 = vmatprep.subr.mxu0 0.0
    %1827 = vmatpush1.msra.mxu0 0.0
    %1828 = vmatprep.subr.mxu0 0.0
    %1829 = vmatpush1.msra.mxu0 0.0
    %1830 = vmatprep.subr.mxu0 0.0
    %1831 = vmatpush1.msra.mxu0 0.0
    %1832 = vmatprep.subr.mxu0 0.0
    %1833 = vmatpush1.msra.mxu0 0.0
    %1834 = vmatprep.subr.mxu0 0.0
    %1835 = vmatpush1.msra.mxu0 0.0
    %1836 = vmatprep.subr.mxu0 0.0
    %1837 = vmatpush1.msra.mxu0 0.0
    %1838 = vmatprep.subr.mxu0 0.0
    %1839 = vmatpush1.msra.mxu0 0.0
    %1840 = vmatprep.subr.mxu0 0.0
    %1841 = vmatpush1.msra.mxu0 0.0
    %1842 = vmatprep.subr.mxu0 0.0
    %1843 = vmatpush1.msra.mxu0 0.0
    %1844 = vmatprep.subr.mxu0 0.0
    %1845 = vmatpush1.msra.mxu0 0.0
    %1846 = vmatprep.subr.mxu0 0.0
    %1847 = vmatpush1.msra.mxu0 0.0
    %1848 = vmatprep.subr.mxu0 0.0
    %1849 = vmatpush1.msra.mxu0 0.0
    %1850 = vmatprep.subr.mxu0 0.0
    %1851 = vmatpush1.msra.mxu0 0.0
    %1852 = vmatprep.subr.mxu0 0.0
    %1853 = vmatpush1.msra.mxu0 0.0
    %1854 = vmatprep.subr.mxu0 0.0
    %1855 = vmatpush1.msra.mxu0 0.0
    %1856 = vmatprep.subr.mxu0 0.0
    %1857 = vmatpush1.msra.mxu0 0.0
    %1858 = vmatprep.subr.mxu0 0.0
    %1859 = vmatpush1.msra.mxu0 0.0
    %1860 = vmatprep.subr.mxu0 0.0
    %1861 = vmatpush1.msra.mxu0 0.0
    %1862 = vmatprep.subr.mxu0 0.0
    %1863 = vmatpush1.msra.mxu0 0.0
    %1864 = vmatprep.subr.mxu0 0.0
    %1865 = vmatpush1.msra.mxu0 0.0
    %1866 = vmatprep.subr.mxu0 0.0
    %1867 = vmatpush1.msra.mxu0 0.0
    %1868 = vmatprep.subr.mxu0 0.0
    %1869 = vmatpush1.msra.mxu0 0.0
    %1870 = vmatprep.subr.mxu0 0.0
    %1871 = vmatpush1.msra.mxu0 0.0
    %1872 = vmatprep.subr.mxu0 0.0
    %1873 = vmatpush1.msra.mxu0 0.0
    %1874 = vmatprep.subr.mxu0 0.0
    %1875 = vmatpush1.msra.mxu0 0.0
    %1876 = vmatprep.subr.mxu0 0.0
    %1877 = vmatpush1.msra.mxu0 0.0
    %1878 = vmatprep.subr.mxu0 0.0
    %1879 = vmatpush1.msra.mxu0 0.0
    %1880 = vmatprep.mubr.f32.mxu0 0.0
    %1881 = vmatmul.mubr.f32.gmra.mrb[0].mxu0 %v1814
    %v1882 = vpop.f32.mrb[0].mxu0
    %v1883 = vadd.f32 0.0, %v1882
    %v1884 = vpop.f32.mrb[0].mxu0
    %1885 = vdwg.mxu0
    %v1887 = vsel %vm1022, %v1660, 0
    %1889 = vmatprep.subr.mxu0 0.0
    %1890 = vmatpush1.msra.mxu0 %v1666
    %1891 = vmatprep.subr.mxu0 0.0
    %1892 = vmatpush1.msra.mxu0 0.0
    %1893 = vmatprep.subr.mxu0 0.0
    %1894 = vmatpush1.msra.mxu0 0.0
    %1895 = vmatprep.subr.mxu0 0.0
    %1896 = vmatpush1.msra.mxu0 0.0
    %1897 = vmatprep.subr.mxu0 0.0
    %1898 = vmatpush1.msra.mxu0 0.0
    %1899 = vmatprep.subr.mxu0 0.0
    %1900 = vmatpush1.msra.mxu0 0.0
    %1901 = vmatprep.subr.mxu0 0.0
    %1902 = vmatpush1.msra.mxu0 0.0
    %1903 = vmatprep.subr.mxu0 0.0
    %1904 = vmatpush1.msra.mxu0 0.0
    %1905 = vmatprep.subr.mxu0 0.0
    %1906 = vmatpush1.msra.mxu0 0.0
    %1907 = vmatprep.subr.mxu0 0.0
    %1908 = vmatpush1.msra.mxu0 0.0
    %1909 = vmatprep.subr.mxu0 0.0
    %1910 = vmatpush1.msra.mxu0 0.0
    %1911 = vmatprep.subr.mxu0 0.0
    %1912 = vmatpush1.msra.mxu0 0.0
    %1913 = vmatprep.subr.mxu0 0.0
    %1914 = vmatpush1.msra.mxu0 0.0
    %1915 = vmatprep.subr.mxu0 0.0
    %1916 = vmatpush1.msra.mxu0 0.0
    %1917 = vmatprep.subr.mxu0 0.0
    %1918 = vmatpush1.msra.mxu0 0.0
    %1919 = vmatprep.subr.mxu0 0.0
    %1920 = vmatpush1.msra.mxu0 0.0
    %1921 = vmatprep.subr.mxu0 0.0
    %1922 = vmatpush1.msra.mxu0 0.0
    %1923 = vmatprep.subr.mxu0 0.0
    %1924 = vmatpush1.msra.mxu0 0.0
    %1925 = vmatprep.subr.mxu0 0.0
    %1926 = vmatpush1.msra.mxu0 0.0
    %1927 = vmatprep.subr.mxu0 0.0
    %1928 = vmatpush1.msra.mxu0 0.0
    %1929 = vmatprep.subr.mxu0 0.0
    %1930 = vmatpush1.msra.mxu0 0.0
    %1931 = vmatprep.subr.mxu0 0.0
    %1932 = vmatpush1.msra.mxu0 0.0
    %1933 = vmatprep.subr.mxu0 0.0
    %1934 = vmatpush1.msra.mxu0 0.0
    %1935 = vmatprep.subr.mxu0 0.0
    %1936 = vmatpush1.msra.mxu0 0.0
    %1937 = vmatprep.subr.mxu0 0.0
    %1938 = vmatpush1.msra.mxu0 0.0
    %1939 = vmatprep.subr.mxu0 0.0
    %1940 = vmatpush1.msra.mxu0 0.0
    %1941 = vmatprep.subr.mxu0 0.0
    %1942 = vmatpush1.msra.mxu0 0.0
    %1943 = vmatprep.subr.mxu0 0.0
    %1944 = vmatpush1.msra.mxu0 0.0
    %1945 = vmatprep.subr.mxu0 0.0
    %1946 = vmatpush1.msra.mxu0 0.0
    %1947 = vmatprep.subr.mxu0 0.0
    %1948 = vmatpush1.msra.mxu0 0.0
    %1949 = vmatprep.subr.mxu0 0.0
    %1950 = vmatpush1.msra.mxu0 0.0
    %1951 = vmatprep.subr.mxu0 0.0
    %1952 = vmatpush1.msra.mxu0 0.0
    %1953 = vmatprep.mubr.f32.mxu0 0.0
    %1954 = vmatmul.mubr.f32.gmra.mrb[0].mxu0 %v1887
    %v1955 = vpop.f32.mrb[0].mxu0
    %v1956 = vadd.f32 0.0, %v1955
    %v1957 = vpop.f32.mrb[0].mxu0
    %1958 = vdwg.mxu0
    %v1959 = vsel %vm174, %v1737, 0.0
    %v1960 = vsel %vm174, %v1810, 0.0
    %v1961 = vadd.f32 %v1959, %v1960
    %v1962 = vsel %vm174, %v1883, 0.0
    %v1963 = vadd.f32 %v1961, %v1962
    %v1964 = vsel %vm174, %v1956, 0.0
    %v1965 = vadd.f32 %v1963, %v1964
    %v1966 = vadd.f32 %v30, %v1965
    %v1967 = vld [vmem:[%s6] sm:$0x1]
    %v1968 = vlaneseq
    %v1969 = vshrl.u32 %v1968, 7
    %v1970 = vsub.s32 0, %v1969
    %v1971 = vrot.slane %v1967, %v1970
    %v1972 = vadd.f32 %v1966, %v1971
    %v1973 = vsel %vm174, %v1972, 0.0
    %1974 = vadd.xlane.f32.xlu0 %v1973
    %v1975 = vpop.xlane.xlu0 %1974
    %v1976 = vrcp.pop 32.0
    %v1977 = vmul.f32 %v1975, %v1976
    %v1978 = vsub.f32 %v1972, %v1977
    %v1979 = vmul.f32 %v1978, %v1978
    %v1980 = vsel %vm174, %v1979, 0.0
    %1981 = vadd.xlane.f32.xlu0 %v1980
    %v1982 = vpop.xlane.xlu0 %1981
    %v1983 = vmul.f32 %v1982, %v1976
    %v1984 = vadd.f32 %v1983, 1e-05
    %v1985 = vrsqrt.pop %v1984
    %v1986 = vmul.f32 %v1978, %v1985
    %v1987 = vld [vmem:[%s6 + $0x1] sm:$0x1]
    %v1988 = vlaneseq
    %v1989 = vshrl.u32 %v1988, 7
    %v1990 = vsub.s32 0, %v1989
    %v1991 = vrot.slane %v1987, %v1990
    %v1992 = vmul.f32 %v1986, %v1991
    %v1993 = vld [vmem:[%s6 + $0x2] sm:$0x1]
    %v1994 = vlaneseq
    %v1995 = vshrl.u32 %v1994, 7
    %v1996 = vsub.s32 0, %v1995
    %v1997 = vrot.slane %v1993, %v1996
    %v1998 = vadd.f32 %v1992, %v1997
    %v1999 = vsel %vm1022, %v1367, 0.0
    %v2000 = vsel %vm1022, %v1368, 0.0
    %v2001 = vadd.f32 %v1999, %v2000
    %v2002 = vsel %vm1022, %v1369, 0.0
    %v2003 = vadd.f32 %v2001, %v2002
    %v2004 = vsel %vm1022, %v1370, 0.0
    %v2005 = vadd.f32 %v2003, %v2004
    %v2006 = vld [vmem:[%s7] sm:$0xff]
    %v2007 = vld [vmem:[%s7 + $0x8] sm:$0xff]
    %v2008 = vld [vmem:[%s7 + $0x10] sm:$0xff]
    %v2009 = vld [vmem:[%s7 + $0x18] sm:$0xff]
    %2010 = vxpose.xlu0.b32.start [1/16] %v2005, 128
    %2011 = vxpose.xlu0.b32.cont [2/16] 0.0, 128
    %2012 = vxpose.xlu0.b32.cont [3/16] 0.0, 128
    %2013 = vxpose.xlu0.b32.cont [4/16] 0.0, 128
    %2014 = vxpose.xlu0.b32.cont [5/16] 0.0, 128
    %2015 = vxpose.xlu0.b32.cont [6/16] 0.0, 128
    %2016 = vxpose.xlu0.b32.cont [7/16] 0.0, 128
    %2017 = vxpose.xlu0.b32.cont [8/16] 0.0, 128
    %2018 = vxpose.xlu0.b32.cont [9/16] 0.0, 128
    %2019 = vxpose.xlu0.b32.cont [10/16] 0.0, 128
    %2020 = vxpose.xlu0.b32.cont [11/16] 0.0, 128
    %2021 = vxpose.xlu0.b32.cont [12/16] 0.0, 128
    %2022 = vxpose.xlu0.b32.cont [13/16] 0.0, 128
    %2023 = vxpose.xlu0.b32.cont [14/16] 0.0, 128
    %2024 = vxpose.xlu0.b32.cont [15/16] 0.0, 128
    %2025 = vxpose.xlu0.b32.end [16/16] 0.0, 128
    %v2026 = vpop.trf.xlu0
    %v2027 = vpop.trf.xlu0
    %v2028 = vpop.trf.xlu0
    %v2029 = vpop.trf.xlu0
    %v2030 = vpop.trf.xlu0
    %v2031 = vpop.trf.xlu0
    %v2032 = vpop.trf.xlu0
    %v2033 = vpop.trf.xlu0
    %v2034 = vpop.trf.xlu0
    %v2035 = vpop.trf.xlu0
    %v2036 = vpop.trf.xlu0
    %v2037 = vpop.trf.xlu0
    %v2038 = vpop.trf.xlu0
    %v2039 = vpop.trf.xlu0
    %v2040 = vpop.trf.xlu0
    %v2041 = vpop.trf.xlu0
    %v2043 = vsel %vm1022, %v2026, 0
    %2045 = vmatprep.subr.mxu0 %v2007
    %2046 = vmatpush1.msra.mxu0 %v2006
    %2047 = vmatprep.subr.mxu0 0.0
    %2048 = vmatpush1.msra.mxu0 0.0
    %2049 = vmatprep.subr.mxu0 0.0
    %2050 = vmatpush1.msra.mxu0 0.0
    %2051 = vmatprep.subr.mxu0 0.0
    %2052 = vmatpush1.msra.mxu0 0.0
    %2053 = vmatprep.subr.mxu0 0.0
    %2054 = vmatpush1.msra.mxu0 0.0
    %2055 = vmatprep.subr.mxu0 0.0
    %2056 = vmatpush1.msra.mxu0 0.0
    %2057 = vmatprep.subr.mxu0 0.0
    %2058 = vmatpush1.msra.mxu0 0.0
    %2059 = vmatprep.subr.mxu0 0.0
    %2060 = vmatpush1.msra.mxu0 0.0
    %2061 = vmatprep.subr.mxu0 0.0
    %2062 = vmatpush1.msra.mxu0 0.0
    %2063 = vmatprep.subr.mxu0 0.0
    %2064 = vmatpush1.msra.mxu0 0.0
    %2065 = vmatprep.subr.mxu0 0.0
    %2066 = vmatpush1.msra.mxu0 0.0
    %2067 = vmatprep.subr.mxu0 0.0
    %2068 = vmatpush1.msra.mxu0 0.0
    %2069 = vmatprep.subr.mxu0 0.0
    %2070 = vmatpush1.msra.mxu0 0.0
    %2071 = vmatprep.subr.mxu0 0.0
    %2072 = vmatpush1.msra.mxu0 0.0
    %2073 = vmatprep.subr.mxu0 0.0
    %2074 = vmatpush1.msra.mxu0 0.0
    %2075 = vmatprep.subr.mxu0 0.0
    %2076 = vmatpush1.msra.mxu0 0.0
    %2077 = vmatprep.subr.mxu0 0.0
    %2078 = vmatpush1.msra.mxu0 0.0
    %2079 = vmatprep.subr.mxu0 0.0
    %2080 = vmatpush1.msra.mxu0 0.0
    %2081 = vmatprep.subr.mxu0 0.0
    %2082 = vmatpush1.msra.mxu0 0.0
    %2083 = vmatprep.subr.mxu0 0.0
    %2084 = vmatpush1.msra.mxu0 0.0
    %2085 = vmatprep.subr.mxu0 0.0
    %2086 = vmatpush1.msra.mxu0 0.0
    %2087 = vmatprep.subr.mxu0 0.0
    %2088 = vmatpush1.msra.mxu0 0.0
    %2089 = vmatprep.subr.mxu0 0.0
    %2090 = vmatpush1.msra.mxu0 0.0
    %2091 = vmatprep.subr.mxu0 0.0
    %2092 = vmatpush1.msra.mxu0 0.0
    %2093 = vmatprep.subr.mxu0 0.0
    %2094 = vmatpush1.msra.mxu0 0.0
    %2095 = vmatprep.subr.mxu0 0.0
    %2096 = vmatpush1.msra.mxu0 0.0
    %2097 = vmatprep.subr.mxu0 0.0
    %2098 = vmatpush1.msra.mxu0 0.0
    %2099 = vmatprep.subr.mxu0 0.0
    %2100 = vmatpush1.msra.mxu0 0.0
    %2101 = vmatprep.subr.mxu0 0.0
    %2102 = vmatpush1.msra.mxu0 0.0
    %2103 = vmatprep.subr.mxu0 0.0
    %2104 = vmatpush1.msra.mxu0 0.0
    %2105 = vmatprep.subr.mxu0 0.0
    %2106 = vmatpush1.msra.mxu0 0.0
    %2107 = vmatprep.subr.mxu0 0.0
    %2108 = vmatpush1.msra.mxu0 0.0
    %2109 = vmatprep.mubr.f32.mxu0 0.0
    %2110 = vmatmul.mubr.f32.gmra.mrb[0].mxu0 %v2043
    %v2111 = vpop.f32.mrb[0].mxu0
    %v2112 = vadd.f32 0.0, %v2111
    %v2113 = vpop.f32.mrb[0].mxu0
    %v2114 = vadd.f32 0.0, %v2113
    %2115 = vdwg.mxu0
    %2116 = vmatprep.subr.mxu0 %v2009
    %2117 = vmatpush1.msra.mxu0 %v2008
    %2118 = vmatprep.subr.mxu0 0.0
    %2119 = vmatpush1.msra.mxu0 0.0
    %2120 = vmatprep.subr.mxu0 0.0
    %2121 = vmatpush1.msra.mxu0 0.0
    %2122 = vmatprep.subr.mxu0 0.0
    %2123 = vmatpush1.msra.mxu0 0.0
    %2124 = vmatprep.subr.mxu0 0.0
    %2125 = vmatpush1.msra.mxu0 0.0
    %2126 = vmatprep.subr.mxu0 0.0
    %2127 = vmatpush1.msra.mxu0 0.0
    %2128 = vmatprep.subr.mxu0 0.0
    %2129 = vmatpush1.msra.mxu0 0.0
    %2130 = vmatprep.subr.mxu0 0.0
    %2131 = vmatpush1.msra.mxu0 0.0
    %2132 = vmatprep.subr.mxu0 0.0
    %2133 = vmatpush1.msra.mxu0 0.0
    %2134 = vmatprep.subr.mxu0 0.0
    %2135 = vmatpush1.msra.mxu0 0.0
    %2136 = vmatprep.subr.mxu0 0.0
    %2137 = vmatpush1.msra.mxu0 0.0
    %2138 = vmatprep.subr.mxu0 0.0
    %2139 = vmatpush1.msra.mxu0 0.0
    %2140 = vmatprep.subr.mxu0 0.0
    %2141 = vmatpush1.msra.mxu0 0.0
    %2142 = vmatprep.subr.mxu0 0.0
    %2143 = vmatpush1.msra.mxu0 0.0
    %2144 = vmatprep.subr.mxu0 0.0
    %2145 = vmatpush1.msra.mxu0 0.0
    %2146 = vmatprep.subr.mxu0 0.0
    %2147 = vmatpush1.msra.mxu0 0.0
    %2148 = vmatprep.subr.mxu0 0.0
    %2149 = vmatpush1.msra.mxu0 0.0
    %2150 = vmatprep.subr.mxu0 0.0
    %2151 = vmatpush1.msra.mxu0 0.0
    %2152 = vmatprep.subr.mxu0 0.0
    %2153 = vmatpush1.msra.mxu0 0.0
    %2154 = vmatprep.subr.mxu0 0.0
    %2155 = vmatpush1.msra.mxu0 0.0
    %2156 = vmatprep.subr.mxu0 0.0
    %2157 = vmatpush1.msra.mxu0 0.0
    %2158 = vmatprep.subr.mxu0 0.0
    %2159 = vmatpush1.msra.mxu0 0.0
    %2160 = vmatprep.subr.mxu0 0.0
    %2161 = vmatpush1.msra.mxu0 0.0
    %2162 = vmatprep.subr.mxu0 0.0
    %2163 = vmatpush1.msra.mxu0 0.0
    %2164 = vmatprep.subr.mxu0 0.0
    %2165 = vmatpush1.msra.mxu0 0.0
    %2166 = vmatprep.subr.mxu0 0.0
    %2167 = vmatpush1.msra.mxu0 0.0
    %2168 = vmatprep.subr.mxu0 0.0
    %2169 = vmatpush1.msra.mxu0 0.0
    %2170 = vmatprep.subr.mxu0 0.0
    %2171 = vmatpush1.msra.mxu0 0.0
    %2172 = vmatprep.subr.mxu0 0.0
    %2173 = vmatpush1.msra.mxu0 0.0
    %2174 = vmatprep.subr.mxu0 0.0
    %2175 = vmatpush1.msra.mxu0 0.0
    %2176 = vmatprep.subr.mxu0 0.0
    %2177 = vmatpush1.msra.mxu0 0.0
    %2178 = vmatprep.subr.mxu0 0.0
    %2179 = vmatpush1.msra.mxu0 0.0
    %2180 = vmatprep.mubr.f32.mxu0 0.0
    %2181 = vmatmul.mubr.f32.gmra.mrb[0].mxu0 %v2043
    %v2182 = vpop.f32.mrb[0].mxu0
    %v2183 = vadd.f32 0.0, %v2182
    %v2184 = vpop.f32.mrb[0].mxu0
    %v2185 = vadd.f32 0.0, %v2184
    %2186 = vdwg.mxu0
    %v2187 = vld [vmem:[%s6 + $0x3] sm:$0x1]
    %s2189 = vtos %v2187
    %v2190 = vstv %s2189
    %v2192 = vmul.f32 %v2006, %v2190
    %v2193 = vmul.f32 %v2007, %v2190
    %2194 = vrot.lane.b32.xlu0 %v2187, 127
    %v2195 = vpop.permute.xlu0 %2194
    %s2196 = vtos %v2195
    %v2197 = vstv %s2196
    %v2199 = vmul.f32 %v2112, %v2197
    %v2200 = vmul.f32 %v2114, %v2197
    %v2201 = vadd.f32 %v2192, %v2199
    %v2202 = vadd.f32 %v2193, %v2200
    %2203 = vrot.lane.b32.xlu0 %v2187, 126
    %v2204 = vpop.permute.xlu0 %2203
    %s2205 = vtos %v2204
    %v2206 = vstv %s2205
    %v2208 = vmul.f32 %v2183, %v2206
    %v2209 = vmul.f32 %v2185, %v2206
    %v2210 = vadd.f32 %v2008, %v2208
    %v2211 = vadd.f32 %v2009, %v2209
    %v2212 = vadd.f32 %v2210, %v2211
    %2213 = vadd.xlane.f32.xlu0 %v2212
    %v2214 = vpop.xlane.xlu0 %2213
    %v2215 = vrcp.pop 256.0
    %v2216 = vmul.f32 %v2214, %v2215
    %v2217 = vsub.f32 %v2210, %v2216
    %v2218 = vsub.f32 %v2211, %v2216
    %v2219 = vmul.f32 %v2217, %v2217
    %v2220 = vmul.f32 %v2218, %v2218
    %v2221 = vadd.f32 %v2219, %v2220
    %2222 = vadd.xlane.f32.xlu0 %v2221
    %v2223 = vpop.xlane.xlu0 %2222
    %v2224 = vmul.f32 %v2223, %v2215
    %v2225 = vadd.f32 %v2224, 1e-05
    %v2226 = vrsqrt.pop %v2225
    %v2227 = vmul.f32 %v2217, %v2226
    %v2228 = vmul.f32 %v2218, %v2226
    %v2229 = vsel %vm174, %v1998, 0.0
    %2230 = vst [vmem:[#allocation2] sm:$0xff] %v2229
    %2231 = vst [vmem:[#allocation2 + $0x8] sm:$0xff] %v2201
    %2232 = vst [vmem:[#allocation2 + $0x10] sm:$0xff] %v2202
    %2233 = vst [vmem:[#allocation2 + $0x18] sm:$0xff] %v2227
    %2234 = vst [vmem:[#allocation2 + $0x20] sm:$0xff] %v2228
    // Predicated region
    $region34: #{tpu_custom_call.1} parent=1 // pred_check
      _
    $region35: #{tpu_custom_call.1} parent=1 // pred_check_branch
      %2236 = sbr.rel (0) target = $region37
    $region36: #{tpu_custom_call.1} parent=1 // pred_region
      %s2238 = ssub.s32 640, 640
      %2239 = vsyncadd [#allocation3], %s2238
      %s2241 = sshll.u32 [#allocation2], 4
      %s2242 = int_to_ptr.vmem [resolvable:$true] %s2241
      %2244 = dma.vmem_to_hbm [thread:$0]  %s2242, 640, %s8, [#allocation3]
    $region37: #{tpu_custom_call.1} parent=1 // pred_fallthru
      _
    // Predicated region
    $region38: #{tpu_custom_call.1} parent=1 // pred_check
      _
    $region39: #{tpu_custom_call.1} parent=1 // pred_check_branch
      %2246 = sbr.rel (0) target = $region41
    $region40: #{tpu_custom_call.1} parent=1 // pred_region
      %2247 = dma.done [#allocation3], 640
    $region41: #{tpu_custom_call.1} parent=1 // pred_fallthru
      _
    %2248 = vsyncpa [#allocation3], 1

</llo_original>
